<compile_context>
chip_gen: v5e
topology: v5e:2x2
jax: 0.10.0
libtpu: 0.0.40
codegen_flags: <defaults>
</compile_context>

<pallas_src>
import jax
import jax.numpy as jnp
import numpy as np
from jax.experimental import pallas as pl
from jax.experimental.pallas import tpu as pltpu

# ---------------- config ----------------
BATCH = 8            # fills the 8 sublanes of every vreg (perf-review item)
NOISE_DIM = 16
TEXT_DIM = 32
HIDDEN = 32
SEQ_LEN = 8
FEAT = 16
IN_DIM = NOISE_DIM + TEXT_DIM
LANES = 128          # lane width of every packed slab (== 4*HIDDEN here)
assert 4 * HIDDEN == LANES

# ---------------- packed parameter-slab layout (rows, all multiples of 8) ----------------
ROW_WX = 0                              # (128, 128)  folded input->gates1, rows IN_DIM..127 zero
ROW_WHH1 = 128                          # (H, 128)    layer-1 hidden->gates
ROW_WIH2 = ROW_WHH1 + HIDDEN            # (H, 128)    layer-2 input->gates
ROW_WHH2 = ROW_WIH2 + HIDDEN            # (H, 128)    layer-2 hidden->gates
ROW_WOUT = ROW_WHH2 + HIDDEN            # (H, 128)    output proj, cols FEAT..127 zero
ROW_B1 = ROW_WOUT + HIDDEN              # (B, 128)    b_in@w_ih1 + b1, pre-broadcast
ROW_B2 = ROW_B1 + BATCH                 # (B, 128)    b2, pre-broadcast
ROW_BOUT = ROW_B2 + BATCH               # (T*B, 128)  b_out, pre-broadcast, cols FEAT..127 zero
P_ROWS = ROW_BOUT + SEQ_LEN * BATCH     # 336


# ---------------- Pallas kernel ----------------
def _lstm_gen_kernel(x_ref, p_ref, out_ref, h2_scr):
    """x_ref: (B, 128) [noise|text|0]; p_ref: (P_ROWS, 128) packed params;
    out_ref: (T*B, 128) lane-padded output; h2_scr: (T*B, H) VMEM scratch."""
    f32 = jnp.float32
    B = x_ref.shape[0]
    T = out_ref.shape[0] // B
    H = HIDDEN

    # Static, sublane-aligned views of the packed parameter slab (single DMA'd input).
    w_x = p_ref[ROW_WX:ROW_WX + LANES, :]
    w_hh1 = p_ref[ROW_WHH1:ROW_WHH1 + H, :]
    w_ih2 = p_ref[ROW_WIH2:ROW_WIH2 + H, :]
    w_hh2 = p_ref[ROW_WHH2:ROW_WHH2 + H, :]
    w_out = p_ref[ROW_WOUT:ROW_WOUT + H, :]
    b1 = p_ref[ROW_B1:ROW_B1 + B, :]            # pre-broadcast to B rows offline
    b2 = p_ref[ROW_B2:ROW_B2 + B, :]
    b_out = p_ref[ROW_BOUT:ROW_BOUT + T * B, :]  # pre-broadcast to T*B rows offline

    def cell(gates, c_prev):
        # Gate order (i, f, o | g): one sigmoid over 3H lanes + one tanh over H.
        sg = jax.nn.sigmoid(gates[:, : 3 * H])
        g = jnp.tanh(gates[:, 3 * H:])
        i = sg[:, :H]
        f = sg[:, H: 2 * H]
        o = sg[:, 2 * H:]
        c_new = i * g if c_prev is None else f * c_prev + i * g
        h_new = o * jnp.tanh(c_new)
        return h_new, c_new

    # Layer-1 input contribution is time-invariant (the LSTM input is the same
    # projected vector every step; input_proj + its bias are folded into w_x/b1
    # offline, dropout is identity in eval mode).
    gates_x1 = jnp.dot(x_ref[...], w_x, preferred_element_type=f32) + b1

    # ---- peeled t = 0 (h1 = c1 = h2 = c2 = 0: no h@w_hh dots, no f*c term) ----
    h1, c1 = cell(gates_x1, None)
    gates2 = jnp.dot(h1, w_ih2, preferred_element_type=f32) + b2
    h2, c2 = cell(gates2, None)
    h2_scr[0:B, :] = h2

    # ---- t = 1 .. T-1, fully unrolled fused two-layer recurrence ----
    for t in range(1, T):
        gates1 = gates_x1 + jnp.dot(h1, w_hh1, preferred_element_type=f32)
        h1, c1 = cell(gates1, c1)
        # Un-fused layer-2 dots: the h2@w_hh2 push does not depend on cell1(t),
        # so it can issue right after cell2(t-1) and overlap layer-1's EUP work.
        gates2 = (jnp.dot(h2, w_hh2, preferred_element_type=f32) + b2
                  + jnp.dot(h1, w_ih2, preferred_element_type=f32))
        h2, c2 = cell(gates2, c2)
        h2_scr[t * B:(t + 1) * B, :] = h2     # hidden under next step's MXU/EUP work

    # ---- hoisted output projection + tanh: one matmul, one lane-dense store ----
    y = jnp.tanh(jnp.dot(h2_scr[...], w_out, preferred_element_type=f32) + b_out)
    out_ref[...] = y


# ---------------- wrapper ----------------
@jax.jit
def lstm_text_to_music_forward(noise, text_embedding, param_slab):
    """Pallas implementation of LSTMTextToMusicGenerator.forward (eval mode).

    `param_slab` must come from prepare_kernel_params (gate-reordered / folded /
    lane-padded / packed). Batch must equal BATCH (bias rows are pre-broadcast
    to that batch in the slab).
    """
    B = noise.shape[0]

    # Pack the activations into one lane-dense (B, 128) slab (layout plumbing).
    x = jnp.zeros((B, LANES), jnp.float32)
    x = x.at[:, :NOISE_DIM].set(noise.astype(jnp.float32))
    x = x.at[:, NOISE_DIM:IN_DIM].set(text_embedding.astype(jnp.float32))

    # Single gridless invocation: total resident footprint ~200 KiB, far below
    # VMEM on v5e/v6e/v7x. (On v7x, add a parallel batch grid axis once B >= 16.)
    out_flat = pl.pallas_call(
        _lstm_gen_kernel,
        out_shape=jax.ShapeDtypeStruct((SEQ_LEN * B, LANES), jnp.float32),
        in_specs=[pl.BlockSpec(memory_space=pltpu.MemorySpace.VMEM)] * 2,
        out_specs=pl.BlockSpec(memory_space=pltpu.MemorySpace.VMEM),
        scratch_shapes=[pltpu.VMEM((SEQ_LEN * B, HIDDEN), jnp.float32)],
    )(x, param_slab)

    # (T*B, 128) time-major -> (T, B, F) -> (B, T, F) to match batch_first output.
    out = out_flat[:, :FEAT].reshape(SEQ_LEN, B, FEAT)
    return jnp.transpose(out, (1, 0, 2))


# ---------------- offline parameter preparation ----------------
def _reorder_gates_np(w):
    """Columns PyTorch (i, f, g, o) -> kernel (i, f, o, g)."""
    i, f, g, o = np.split(w, 4, axis=-1)
    return np.concatenate([i, f, o, g], axis=-1)


def prepare_kernel_params(p, batch=BATCH):
    """One-time offline transform: reorder gates, fold input_proj into layer 1
    (float64 accumulation, so the fold itself adds no rounding error), pad the
    output projection to 128 lanes, pre-broadcast biases, and pack everything
    into a single lane-dense (P_ROWS, 128) f32 slab."""
    f64 = np.float64
    w_in = np.asarray(p["w_in"], f64)
    b_in = np.asarray(p["b_in"], f64)
    w_ih1 = _reorder_gates_np(np.asarray(p["w_ih1"], f64))
    w_hh1 = _reorder_gates_np(np.asarray(p["w_hh1"], f64))
    b1 = _reorder_gates_np(np.asarray(p["b1"], f64))
    w_ih2 = _reorder_gates_np(np.asarray(p["w_ih2"], f64))
    w_hh2 = _reorder_gates_np(np.asarray(p["w_hh2"], f64))
    b2 = _reorder_gates_np(np.asarray(p["b2"], f64))
    w_out = np.asarray(p["w_out"], f64)
    b_out = np.asarray(p["b_out"], f64)

    # Fold input_proj into layer-1 (no nonlinearity between them; dropout = identity).
    w_x = w_in @ w_ih1                    # (IN_DIM, 4H)
    b1f = b_in @ w_ih1 + b1               # (1, 4H)

    slab = np.zeros((P_ROWS, LANES), np.float32)
    slab[ROW_WX:ROW_WX + IN_DIM, :] = w_x
    slab[ROW_WHH1:ROW_WHH1 + HIDDEN, :] = w_hh1
    slab[ROW_WIH2:ROW_WIH2 + HIDDEN, :] = w_ih2
    slab[ROW_WHH2:ROW_WHH2 + HIDDEN, :] = w_hh2
    slab[ROW_WOUT:ROW_WOUT + HIDDEN, :FEAT] = w_out         # cols FEAT..127 stay 0
    slab[ROW_B1:ROW_B1 + batch, :] = np.broadcast_to(b1f, (batch, LANES))
    slab[ROW_B2:ROW_B2 + batch, :] = np.broadcast_to(b2, (batch, LANES))
    slab[ROW_BOUT:ROW_BOUT + SEQ_LEN * batch, :FEAT] = np.broadcast_to(
        b_out, (SEQ_LEN * batch, FEAT))                      # cols FEAT..127 stay 0
    return jnp.asarray(slab)


# ---------------- pure-JAX reference (mirrors PyTorch math) ----------------
def reference_forward(noise, text_embedding, params, seq_length=SEQ_LEN):
    x = jnp.concatenate([noise, text_embedding], axis=1)
    xp = x @ params["w_in"] + params["b_in"]           # input_proj (dropout = identity)
    B = x.shape[0]
    H = HIDDEN

    def cell(x_t, h, c, w_ih, w_hh, b):
        gates = x_t @ w_ih + h @ w_hh + b
        i = jax.nn.sigmoid(gates[:, 0:H])
        f = jax.nn.sigmoid(gates[:, H:2 * H])
        g = jnp.tanh(gates[:, 2 * H:3 * H])
        o = jax.nn.sigmoid(gates[:, 3 * H:4 * H])
        c = f * c + i * g
        h = o * jnp.tanh(c)
        return h, c

    # layer 1
    h = c = jnp.zeros((B, H), jnp.float32)
    seq1 = []
    for _ in range(seq_length):
        h, c = cell(xp, h, c, params["w_ih1"], params["w_hh1"], params["b1"])
        seq1.append(h)
    # layer 2 (inter-layer dropout = identity in eval mode)
    h = c = jnp.zeros((B, H), jnp.float32)
    outs = []
    for t in range(seq_length):
        h, c = cell(seq1[t], h, c, params["w_ih2"], params["w_hh2"], params["b2"])
        outs.append(jnp.tanh(h @ params["w_out"] + params["b_out"]))
    return jnp.stack(outs, axis=1)                     # (B, T, F)


# ---------------- deterministic parameter init (PyTorch-equivalent layout) ----------------
def make_params(key):
    ks = jax.random.split(key, 10)
    scale = 0.1
    return {
        "w_in":  scale * jax.random.normal(ks[0], (IN_DIM, HIDDEN), jnp.float32),
        "b_in":  scale * jax.random.normal(ks[1], (1, HIDDEN), jnp.float32),
        "w_ih1": scale * jax.random.normal(ks[2], (HIDDEN, 4 * HIDDEN), jnp.float32),
        "w_hh1": scale * jax.random.normal(ks[3], (HIDDEN, 4 * HIDDEN), jnp.float32),
        "b1":    scale * jax.random.normal(ks[4], (1, 4 * HIDDEN), jnp.float32),
        "w_ih2": scale * jax.random.normal(ks[5], (HIDDEN, 4 * HIDDEN), jnp.float32),
        "w_hh2": scale * jax.random.normal(ks[6], (HIDDEN, 4 * HIDDEN), jnp.float32),
        "b2":    scale * jax.random.normal(ks[7], (1, 4 * HIDDEN), jnp.float32),
        "w_out": scale * jax.random.normal(ks[8], (HIDDEN, FEAT), jnp.float32),
        "b_out": scale * jax.random.normal(ks[9], (1, FEAT), jnp.float32),
    }


if __name__ == "__main__":
    key = jax.random.PRNGKey(0)
    k_noise, k_text, k_params = jax.random.split(key, 3)

    noise = jax.random.normal(k_noise, (BATCH, NOISE_DIM), jnp.float32)
    text_embedding = jax.random.normal(k_text, (BATCH, TEXT_DIM), jnp.float32)
    params = make_params(k_params)
    param_slab = prepare_kernel_params(params)          # offline, one time

    out = lstm_text_to_music_forward(noise, text_embedding, param_slab)
    out = jax.block_until_ready(out)

    ref = reference_forward(noise, text_embedding, params)
    assert out.shape == (BATCH, SEQ_LEN, FEAT), out.shape
    # TODO(synk): nn.Dropout is train-mode only; eval forward is identity, so omitted.
    # Slightly looser than 1e-5: folding input_proj into w_ih1 reorders f32 sums.
    np.testing.assert_allclose(np.asarray(out), np.asarray(ref), atol=5e-5, rtol=5e-5)

    print("KERNEL_OK")
</pallas_src>

<mosaic_0001>
module attributes {stable_mosaic.version = 11 : i64} {
  func.func @_lstm_gen_kernel(%arg0: memref<8x128xf32, #tpu.memory_space<vmem>>, %arg1: memref<336x128xf32, #tpu.memory_space<vmem>>, %arg2: memref<64x128xf32, #tpu.memory_space<vmem>>, %arg3: memref<64x32xf32, #tpu.memory_space<vmem>>) attributes {dimension_semantics = [], scalar_prefetch = 0 : i64, scratch_operands = 1 : i64, tpu.core_type = #tpu.core_type<tc>} {
    %c0 = arith.constant 0 : index
    %c0_0 = arith.constant 0 : index
    %0 = vector.load %arg1[%c0, %c0_0] : memref<336x128xf32, #tpu.memory_space<vmem>>, vector<128x128xf32>
    %c128 = arith.constant 128 : index
    %c0_1 = arith.constant 0 : index
    %1 = vector.load %arg1[%c128, %c0_1] : memref<336x128xf32, #tpu.memory_space<vmem>>, vector<32x128xf32>
    %c160 = arith.constant 160 : index
    %c0_2 = arith.constant 0 : index
    %2 = vector.load %arg1[%c160, %c0_2] : memref<336x128xf32, #tpu.memory_space<vmem>>, vector<32x128xf32>
    %c192 = arith.constant 192 : index
    %c0_3 = arith.constant 0 : index
    %3 = vector.load %arg1[%c192, %c0_3] : memref<336x128xf32, #tpu.memory_space<vmem>>, vector<32x128xf32>
    %c224 = arith.constant 224 : index
    %c0_4 = arith.constant 0 : index
    %4 = vector.load %arg1[%c224, %c0_4] : memref<336x128xf32, #tpu.memory_space<vmem>>, vector<32x128xf32>
    %c256 = arith.constant 256 : index
    %c0_5 = arith.constant 0 : index
    %5 = vector.load %arg1[%c256, %c0_5] : memref<336x128xf32, #tpu.memory_space<vmem>>, vector<8x128xf32>
    %c264 = arith.constant 264 : index
    %c0_6 = arith.constant 0 : index
    %6 = vector.load %arg1[%c264, %c0_6] : memref<336x128xf32, #tpu.memory_space<vmem>>, vector<8x128xf32>
    %c272 = arith.constant 272 : index
    %c0_7 = arith.constant 0 : index
    %7 = vector.load %arg1[%c272, %c0_7] : memref<336x128xf32, #tpu.memory_space<vmem>>, vector<64x128xf32>
    %c0_8 = arith.constant 0 : index
    %c0_9 = arith.constant 0 : index
    %8 = vector.load %arg0[%c0_8, %c0_9] : memref<8x128xf32, #tpu.memory_space<vmem>>, vector<8x128xf32>
    %cst = arith.constant dense<0.000000e+00> : vector<8x128xf32>
    %9 = tpu.matmul %8, %0, %cst {dimension_numbers = #tpu.dot_dimension_numbers<[1], [0], [0], [1], [0, 0, 1, 1], [], []>} : vector<8x128xf32>, vector<128x128xf32>, vector<8x128xf32> -> vector<8x128xf32>
    %10 = arith.addf %9, %5 : vector<8x128xf32>
    %11 = vector.extract_strided_slice %10 {offsets = [0, 0], sizes = [8, 96], strides = [1, 1]} : vector<8x128xf32> to vector<8x96xf32>
    %12 = arith.negf %11 : vector<8x96xf32>
    %13 = math.exp %12 : vector<8x96xf32>
    %cst_10 = arith.constant 1.000000e+00 : f32
    %14 = vector.broadcast %cst_10 : f32 to vector<8x96xf32>
    %15 = arith.addf %14, %13 : vector<8x96xf32>
    %16 = arith.divf %14, %15 : vector<8x96xf32>
    %17 = vector.extract_strided_slice %10 {offsets = [0, 96], sizes = [8, 32], strides = [1, 1]} : vector<8x128xf32> to vector<8x32xf32>
    %18 = math.tanh %17 : vector<8x32xf32>
    %19 = vector.extract_strided_slice %16 {offsets = [0, 0], sizes = [8, 32], strides = [1, 1]} : vector<8x96xf32> to vector<8x32xf32>
    %20 = vector.extract_strided_slice %16 {offsets = [0, 64], sizes = [8, 32], strides = [1, 1]} : vector<8x96xf32> to vector<8x32xf32>
    %21 = arith.mulf %19, %18 : vector<8x32xf32>
    %22 = math.tanh %21 : vector<8x32xf32>
    %23 = arith.mulf %20, %22 : vector<8x32xf32>
    %cst_11 = arith.constant dense<0.000000e+00> : vector<8x128xf32>
    %24 = tpu.matmul %23, %2, %cst_11 {dimension_numbers = #tpu.dot_dimension_numbers<[1], [0], [0], [1], [0, 0, 1, 1], [], []>} : vector<8x32xf32>, vector<32x128xf32>, vector<8x128xf32> -> vector<8x128xf32>
    %25 = arith.addf %24, %6 : vector<8x128xf32>
    %26 = vector.extract_strided_slice %25 {offsets = [0, 0], sizes = [8, 96], strides = [1, 1]} : vector<8x128xf32> to vector<8x96xf32>
    %27 = arith.negf %26 : vector<8x96xf32>
    %28 = math.exp %27 : vector<8x96xf32>
    %cst_12 = arith.constant 1.000000e+00 : f32
    %29 = vector.broadcast %cst_12 : f32 to vector<8x96xf32>
    %30 = arith.addf %29, %28 : vector<8x96xf32>
    %31 = arith.divf %29, %30 : vector<8x96xf32>
    %32 = vector.extract_strided_slice %25 {offsets = [0, 96], sizes = [8, 32], strides = [1, 1]} : vector<8x128xf32> to vector<8x32xf32>
    %33 = math.tanh %32 : vector<8x32xf32>
    %34 = vector.extract_strided_slice %31 {offsets = [0, 0], sizes = [8, 32], strides = [1, 1]} : vector<8x96xf32> to vector<8x32xf32>
    %35 = vector.extract_strided_slice %31 {offsets = [0, 64], sizes = [8, 32], strides = [1, 1]} : vector<8x96xf32> to vector<8x32xf32>
    %36 = arith.mulf %34, %33 : vector<8x32xf32>
    %37 = math.tanh %36 : vector<8x32xf32>
    %38 = arith.mulf %35, %37 : vector<8x32xf32>
    %c0_13 = arith.constant 0 : index
    %c0_14 = arith.constant 0 : index
    %39 = vector.load %arg3[%c0_13, %c0_14] : memref<64x32xf32, #tpu.memory_space<vmem>>, vector<8x32xf32>
    tpu.vector_store %arg3[%c0_13, %c0_14], %38 {strides = array<i32>} : memref<64x32xf32, #tpu.memory_space<vmem>>, vector<8x32xf32>,
    %cst_15 = arith.constant dense<0.000000e+00> : vector<8x128xf32>
    %40 = tpu.matmul %23, %1, %cst_15 {dimension_numbers = #tpu.dot_dimension_numbers<[1], [0], [0], [1], [0, 0, 1, 1], [], []>} : vector<8x32xf32>, vector<32x128xf32>, vector<8x128xf32> -> vector<8x128xf32>
    %41 = arith.addf %10, %40 : vector<8x128xf32>
    %42 = vector.extract_strided_slice %41 {offsets = [0, 0], sizes = [8, 96], strides = [1, 1]} : vector<8x128xf32> to vector<8x96xf32>
    %43 = arith.negf %42 : vector<8x96xf32>
    %44 = math.exp %43 : vector<8x96xf32>
    %cst_16 = arith.constant 1.000000e+00 : f32
    %45 = vector.broadcast %cst_16 : f32 to vector<8x96xf32>
    %46 = arith.addf %45, %44 : vector<8x96xf32>
    %47 = arith.divf %45, %46 : vector<8x96xf32>
    %48 = vector.extract_strided_slice %41 {offsets = [0, 96], sizes = [8, 32], strides = [1, 1]} : vector<8x128xf32> to vector<8x32xf32>
    %49 = math.tanh %48 : vector<8x32xf32>
    %50 = vector.extract_strided_slice %47 {offsets = [0, 0], sizes = [8, 32], strides = [1, 1]} : vector<8x96xf32> to vector<8x32xf32>
    %51 = vector.extract_strided_slice %47 {offsets = [0, 32], sizes = [8, 32], strides = [1, 1]} : vector<8x96xf32> to vector<8x32xf32>
    %52 = vector.extract_strided_slice %47 {offsets = [0, 64], sizes = [8, 32], strides = [1, 1]} : vector<8x96xf32> to vector<8x32xf32>
    %53 = arith.mulf %51, %21 : vector<8x32xf32>
    %54 = arith.mulf %50, %49 : vector<8x32xf32>
    %55 = arith.addf %53, %54 : vector<8x32xf32>
    %56 = math.tanh %55 : vector<8x32xf32>
    %57 = arith.mulf %52, %56 : vector<8x32xf32>
    %cst_17 = arith.constant dense<0.000000e+00> : vector<8x128xf32>
    %58 = tpu.matmul %38, %3, %cst_17 {dimension_numbers = #tpu.dot_dimension_numbers<[1], [0], [0], [1], [0, 0, 1, 1], [], []>} : vector<8x32xf32>, vector<32x128xf32>, vector<8x128xf32> -> vector<8x128xf32>
    %59 = arith.addf %58, %6 : vector<8x128xf32>
    %cst_18 = arith.constant dense<0.000000e+00> : vector<8x128xf32>
    %60 = tpu.matmul %57, %2, %cst_18 {dimension_numbers = #tpu.dot_dimension_numbers<[1], [0], [0], [1], [0, 0, 1, 1], [], []>} : vector<8x32xf32>, vector<32x128xf32>, vector<8x128xf32> -> vector<8x128xf32>
    %61 = arith.addf %59, %60 : vector<8x128xf32>
    %62 = vector.extract_strided_slice %61 {offsets = [0, 0], sizes = [8, 96], strides = [1, 1]} : vector<8x128xf32> to vector<8x96xf32>
    %63 = arith.negf %62 : vector<8x96xf32>
    %64 = math.exp %63 : vector<8x96xf32>
    %cst_19 = arith.constant 1.000000e+00 : f32
    %65 = vector.broadcast %cst_19 : f32 to vector<8x96xf32>
    %66 = arith.addf %65, %64 : vector<8x96xf32>
    %67 = arith.divf %65, %66 : vector<8x96xf32>
    %68 = vector.extract_strided_slice %61 {offsets = [0, 96], sizes = [8, 32], strides = [1, 1]} : vector<8x128xf32> to vector<8x32xf32>
    %69 = math.tanh %68 : vector<8x32xf32>
    %70 = vector.extract_strided_slice %67 {offsets = [0, 0], sizes = [8, 32], strides = [1, 1]} : vector<8x96xf32> to vector<8x32xf32>
    %71 = vector.extract_strided_slice %67 {offsets = [0, 32], sizes = [8, 32], strides = [1, 1]} : vector<8x96xf32> to vector<8x32xf32>
    %72 = vector.extract_strided_slice %67 {offsets = [0, 64], sizes = [8, 32], strides = [1, 1]} : vector<8x96xf32> to vector<8x32xf32>
    %73 = arith.mulf %71, %36 : vector<8x32xf32>
    %74 = arith.mulf %70, %69 : vector<8x32xf32>
    %75 = arith.addf %73, %74 : vector<8x32xf32>
    %76 = math.tanh %75 : vector<8x32xf32>
    %77 = arith.mulf %72, %76 : vector<8x32xf32>
    %c8 = arith.constant 8 : index
    %c0_20 = arith.constant 0 : index
    %78 = vector.load %arg3[%c8, %c0_20] : memref<64x32xf32, #tpu.memory_space<vmem>>, vector<8x32xf32>
    tpu.vector_store %arg3[%c8, %c0_20], %77 {strides = array<i32>} : memref<64x32xf32, #tpu.memory_space<vmem>>, vector<8x32xf32>,
    %cst_21 = arith.constant dense<0.000000e+00> : vector<8x128xf32>
    %79 = tpu.matmul %57, %1, %cst_21 {dimension_numbers = #tpu.dot_dimension_numbers<[1], [0], [0], [1], [0, 0, 1, 1], [], []>} : vector<8x32xf32>, vector<32x128xf32>, vector<8x128xf32> -> vector<8x128xf32>
    %80 = arith.addf %10, %79 : vector<8x128xf32>
    %81 = vector.extract_strided_slice %80 {offsets = [0, 0], sizes = [8, 96], strides = [1, 1]} : vector<8x128xf32> to vector<8x96xf32>
    %82 = arith.negf %81 : vector<8x96xf32>
    %83 = math.exp %82 : vector<8x96xf32>
    %cst_22 = arith.constant 1.000000e+00 : f32
    %84 = vector.broadcast %cst_22 : f32 to vector<8x96xf32>
    %85 = arith.addf %84, %83 : vector<8x96xf32>
    %86 = arith.divf %84, %85 : vector<8x96xf32>
    %87 = vector.extract_strided_slice %80 {offsets = [0, 96], sizes = [8, 32], strides = [1, 1]} : vector<8x128xf32> to vector<8x32xf32>
    %88 = math.tanh %87 : vector<8x32xf32>
    %89 = vector.extract_strided_slice %86 {offsets = [0, 0], sizes = [8, 32], strides = [1, 1]} : vector<8x96xf32> to vector<8x32xf32>
    %90 = vector.extract_strided_slice %86 {offsets = [0, 32], sizes = [8, 32], strides = [1, 1]} : vector<8x96xf32> to vector<8x32xf32>
    %91 = vector.extract_strided_slice %86 {offsets = [0, 64], sizes = [8, 32], strides = [1, 1]} : vector<8x96xf32> to vector<8x32xf32>
    %92 = arith.mulf %90, %55 : vector<8x32xf32>
    %93 = arith.mulf %89, %88 : vector<8x32xf32>
    %94 = arith.addf %92, %93 : vector<8x32xf32>
    %95 = math.tanh %94 : vector<8x32xf32>
    %96 = arith.mulf %91, %95 : vector<8x32xf32>
    %cst_23 = arith.constant dense<0.000000e+00> : vector<8x128xf32>
    %97 = tpu.matmul %77, %3, %cst_23 {dimension_numbers = #tpu.dot_dimension_numbers<[1], [0], [0], [1], [0, 0, 1, 1], [], []>} : vector<8x32xf32>, vector<32x128xf32>, vector<8x128xf32> -> vector<8x128xf32>
    %98 = arith.addf %97, %6 : vector<8x128xf32>
    %cst_24 = arith.constant dense<0.000000e+00> : vector<8x128xf32>
    %99 = tpu.matmul %96, %2, %cst_24 {dimension_numbers = #tpu.dot_dimension_numbers<[1], [0], [0], [1], [0, 0, 1, 1], [], []>} : vector<8x32xf32>, vector<32x128xf32>, vector<8x128xf32> -> vector<8x128xf32>
    %100 = arith.addf %98, %99 : vector<8x128xf32>
    %101 = vector.extract_strided_slice %100 {offsets = [0, 0], sizes = [8, 96], strides = [1, 1]} : vector<8x128xf32> to vector<8x96xf32>
    %102 = arith.negf %101 : vector<8x96xf32>
    %103 = math.exp %102 : vector<8x96xf32>
    %cst_25 = arith.constant 1.000000e+00 : f32
    %104 = vector.broadcast %cst_25 : f32 to vector<8x96xf32>
    %105 = arith.addf %104, %103 : vector<8x96xf32>
    %106 = arith.divf %104, %105 : vector<8x96xf32>
    %107 = vector.extract_strided_slice %100 {offsets = [0, 96], sizes = [8, 32], strides = [1, 1]} : vector<8x128xf32> to vector<8x32xf32>
    %108 = math.tanh %107 : vector<8x32xf32>
    %109 = vector.extract_strided_slice %106 {offsets = [0, 0], sizes = [8, 32], strides = [1, 1]} : vector<8x96xf32> to vector<8x32xf32>
    %110 = vector.extract_strided_slice %106 {offsets = [0, 32], sizes = [8, 32], strides = [1, 1]} : vector<8x96xf32> to vector<8x32xf32>
    %111 = vector.extract_strided_slice %106 {offsets = [0, 64], sizes = [8, 32], strides = [1, 1]} : vector<8x96xf32> to vector<8x32xf32>
    %112 = arith.mulf %110, %75 : vector<8x32xf32>
    %113 = arith.mulf %109, %108 : vector<8x32xf32>
    %114 = arith.addf %112, %113 : vector<8x32xf32>
    %115 = math.tanh %114 : vector<8x32xf32>
    %116 = arith.mulf %111, %115 : vector<8x32xf32>
    %c16 = arith.constant 16 : index
    %c0_26 = arith.constant 0 : index
    %117 = vector.load %arg3[%c16, %c0_26] : memref<64x32xf32, #tpu.memory_space<vmem>>, vector<8x32xf32>
    tpu.vector_store %arg3[%c16, %c0_26], %116 {strides = array<i32>} : memref<64x32xf32, #tpu.memory_space<vmem>>, vector<8x32xf32>,
    %cst_27 = arith.constant dense<0.000000e+00> : vector<8x128xf32>
    %118 = tpu.matmul %96, %1, %cst_27 {dimension_numbers = #tpu.dot_dimension_numbers<[1], [0], [0], [1], [0, 0, 1, 1], [], []>} : vector<8x32xf32>, vector<32x128xf32>, vector<8x128xf32> -> vector<8x128xf32>
    %119 = arith.addf %10, %118 : vector<8x128xf32>
    %120 = vector.extract_strided_slice %119 {offsets = [0, 0], sizes = [8, 96], strides = [1, 1]} : vector<8x128xf32> to vector<8x96xf32>
    %121 = arith.negf %120 : vector<8x96xf32>
    %122 = math.exp %121 : vector<8x96xf32>
    %cst_28 = arith.constant 1.000000e+00 : f32
    %123 = vector.broadcast %cst_28 : f32 to vector<8x96xf32>
    %124 = arith.addf %123, %122 : vector<8x96xf32>
    %125 = arith.divf %123, %124 : vector<8x96xf32>
    %126 = vector.extract_strided_slice %119 {offsets = [0, 96], sizes = [8, 32], strides = [1, 1]} : vector<8x128xf32> to vector<8x32xf32>
    %127 = math.tanh %126 : vector<8x32xf32>
    %128 = vector.extract_strided_slice %125 {offsets = [0, 0], sizes = [8, 32], strides = [1, 1]} : vector<8x96xf32> to vector<8x32xf32>
    %129 = vector.extract_strided_slice %125 {offsets = [0, 32], sizes = [8, 32], strides = [1, 1]} : vector<8x96xf32> to vector<8x32xf32>
    %130 = vector.extract_strided_slice %125 {offsets = [0, 64], sizes = [8, 32], strides = [1, 1]} : vector<8x96xf32> to vector<8x32xf32>
    %131 = arith.mulf %129, %94 : vector<8x32xf32>
    %132 = arith.mulf %128, %127 : vector<8x32xf32>
    %133 = arith.addf %131, %132 : vector<8x32xf32>
    %134 = math.tanh %133 : vector<8x32xf32>
    %135 = arith.mulf %130, %134 : vector<8x32xf32>
    %cst_29 = arith.constant dense<0.000000e+00> : vector<8x128xf32>
    %136 = tpu.matmul %116, %3, %cst_29 {dimension_numbers = #tpu.dot_dimension_numbers<[1], [0], [0], [1], [0, 0, 1, 1], [], []>} : vector<8x32xf32>, vector<32x128xf32>, vector<8x128xf32> -> vector<8x128xf32>
    %137 = arith.addf %136, %6 : vector<8x128xf32>
    %cst_30 = arith.constant dense<0.000000e+00> : vector<8x128xf32>
    %138 = tpu.matmul %135, %2, %cst_30 {dimension_numbers = #tpu.dot_dimension_numbers<[1], [0], [0], [1], [0, 0, 1, 1], [], []>} : vector<8x32xf32>, vector<32x128xf32>, vector<8x128xf32> -> vector<8x128xf32>
    %139 = arith.addf %137, %138 : vector<8x128xf32>
    %140 = vector.extract_strided_slice %139 {offsets = [0, 0], sizes = [8, 96], strides = [1, 1]} : vector<8x128xf32> to vector<8x96xf32>
    %141 = arith.negf %140 : vector<8x96xf32>
    %142 = math.exp %141 : vector<8x96xf32>
    %cst_31 = arith.constant 1.000000e+00 : f32
    %143 = vector.broadcast %cst_31 : f32 to vector<8x96xf32>
    %144 = arith.addf %143, %142 : vector<8x96xf32>
    %145 = arith.divf %143, %144 : vector<8x96xf32>
    %146 = vector.extract_strided_slice %139 {offsets = [0, 96], sizes = [8, 32], strides = [1, 1]} : vector<8x128xf32> to vector<8x32xf32>
    %147 = math.tanh %146 : vector<8x32xf32>
    %148 = vector.extract_strided_slice %145 {offsets = [0, 0], sizes = [8, 32], strides = [1, 1]} : vector<8x96xf32> to vector<8x32xf32>
    %149 = vector.extract_strided_slice %145 {offsets = [0, 32], sizes = [8, 32], strides = [1, 1]} : vector<8x96xf32> to vector<8x32xf32>
    %150 = vector.extract_strided_slice %145 {offsets = [0, 64], sizes = [8, 32], strides = [1, 1]} : vector<8x96xf32> to vector<8x32xf32>
    %151 = arith.mulf %149, %114 : vector<8x32xf32>
    %152 = arith.mulf %148, %147 : vector<8x32xf32>
    %153 = arith.addf %151, %152 : vector<8x32xf32>
    %154 = math.tanh %153 : vector<8x32xf32>
    %155 = arith.mulf %150, %154 : vector<8x32xf32>
    %c24 = arith.constant 24 : index
    %c0_32 = arith.constant 0 : index
    %156 = vector.load %arg3[%c24, %c0_32] : memref<64x32xf32, #tpu.memory_space<vmem>>, vector<8x32xf32>
    tpu.vector_store %arg3[%c24, %c0_32], %155 {strides = array<i32>} : memref<64x32xf32, #tpu.memory_space<vmem>>, vector<8x32xf32>,
    %cst_33 = arith.constant dense<0.000000e+00> : vector<8x128xf32>
    %157 = tpu.matmul %135, %1, %cst_33 {dimension_numbers = #tpu.dot_dimension_numbers<[1], [0], [0], [1], [0, 0, 1, 1], [], []>} : vector<8x32xf32>, vector<32x128xf32>, vector<8x128xf32> -> vector<8x128xf32>
    %158 = arith.addf %10, %157 : vector<8x128xf32>
    %159 = vector.extract_strided_slice %158 {offsets = [0, 0], sizes = [8, 96], strides = [1, 1]} : vector<8x128xf32> to vector<8x96xf32>
    %160 = arith.negf %159 : vector<8x96xf32>
    %161 = math.exp %160 : vector<8x96xf32>
    %cst_34 = arith.constant 1.000000e+00 : f32
    %162 = vector.broadcast %cst_34 : f32 to vector<8x96xf32>
    %163 = arith.addf %162, %161 : vector<8x96xf32>
    %164 = arith.divf %162, %163 : vector<8x96xf32>
    %165 = vector.extract_strided_slice %158 {offsets = [0, 96], sizes = [8, 32], strides = [1, 1]} : vector<8x128xf32> to vector<8x32xf32>
    %166 = math.tanh %165 : vector<8x32xf32>
    %167 = vector.extract_strided_slice %164 {offsets = [0, 0], sizes = [8, 32], strides = [1, 1]} : vector<8x96xf32> to vector<8x32xf32>
    %168 = vector.extract_strided_slice %164 {offsets = [0, 32], sizes = [8, 32], strides = [1, 1]} : vector<8x96xf32> to vector<8x32xf32>
    %169 = vector.extract_strided_slice %164 {offsets = [0, 64], sizes = [8, 32], strides = [1, 1]} : vector<8x96xf32> to vector<8x32xf32>
    %170 = arith.mulf %168, %133 : vector<8x32xf32>
    %171 = arith.mulf %167, %166 : vector<8x32xf32>
    %172 = arith.addf %170, %171 : vector<8x32xf32>
    %173 = math.tanh %172 : vector<8x32xf32>
    %174 = arith.mulf %169, %173 : vector<8x32xf32>
    %cst_35 = arith.constant dense<0.000000e+00> : vector<8x128xf32>
    %175 = tpu.matmul %155, %3, %cst_35 {dimension_numbers = #tpu.dot_dimension_numbers<[1], [0], [0], [1], [0, 0, 1, 1], [], []>} : vector<8x32xf32>, vector<32x128xf32>, vector<8x128xf32> -> vector<8x128xf32>
    %176 = arith.addf %175, %6 : vector<8x128xf32>
    %cst_36 = arith.constant dense<0.000000e+00> : vector<8x128xf32>
    %177 = tpu.matmul %174, %2, %cst_36 {dimension_numbers = #tpu.dot_dimension_numbers<[1], [0], [0], [1], [0, 0, 1, 1], [], []>} : vector<8x32xf32>, vector<32x128xf32>, vector<8x128xf32> -> vector<8x128xf32>
    %178 = arith.addf %176, %177 : vector<8x128xf32>
    %179 = vector.extract_strided_slice %178 {offsets = [0, 0], sizes = [8, 96], strides = [1, 1]} : vector<8x128xf32> to vector<8x96xf32>
    %180 = arith.negf %179 : vector<8x96xf32>
    %181 = math.exp %180 : vector<8x96xf32>
    %cst_37 = arith.constant 1.000000e+00 : f32
    %182 = vector.broadcast %cst_37 : f32 to vector<8x96xf32>
    %183 = arith.addf %182, %181 : vector<8x96xf32>
    %184 = arith.divf %182, %183 : vector<8x96xf32>
    %185 = vector.extract_strided_slice %178 {offsets = [0, 96], sizes = [8, 32], strides = [1, 1]} : vector<8x128xf32> to vector<8x32xf32>
    %186 = math.tanh %185 : vector<8x32xf32>
    %187 = vector.extract_strided_slice %184 {offsets = [0, 0], sizes = [8, 32], strides = [1, 1]} : vector<8x96xf32> to vector<8x32xf32>
    %188 = vector.extract_strided_slice %184 {offsets = [0, 32], sizes = [8, 32], strides = [1, 1]} : vector<8x96xf32> to vector<8x32xf32>
    %189 = vector.extract_strided_slice %184 {offsets = [0, 64], sizes = [8, 32], strides = [1, 1]} : vector<8x96xf32> to vector<8x32xf32>
    %190 = arith.mulf %188, %153 : vector<8x32xf32>
    %191 = arith.mulf %187, %186 : vector<8x32xf32>
    %192 = arith.addf %190, %191 : vector<8x32xf32>
    %193 = math.tanh %192 : vector<8x32xf32>
    %194 = arith.mulf %189, %193 : vector<8x32xf32>
    %c32 = arith.constant 32 : index
    %c0_38 = arith.constant 0 : index
    %195 = vector.load %arg3[%c32, %c0_38] : memref<64x32xf32, #tpu.memory_space<vmem>>, vector<8x32xf32>
    tpu.vector_store %arg3[%c32, %c0_38], %194 {strides = array<i32>} : memref<64x32xf32, #tpu.memory_space<vmem>>, vector<8x32xf32>,
    %cst_39 = arith.constant dense<0.000000e+00> : vector<8x128xf32>
    %196 = tpu.matmul %174, %1, %cst_39 {dimension_numbers = #tpu.dot_dimension_numbers<[1], [0], [0], [1], [0, 0, 1, 1], [], []>} : vector<8x32xf32>, vector<32x128xf32>, vector<8x128xf32> -> vector<8x128xf32>
    %197 = arith.addf %10, %196 : vector<8x128xf32>
    %198 = vector.extract_strided_slice %197 {offsets = [0, 0], sizes = [8, 96], strides = [1, 1]} : vector<8x128xf32> to vector<8x96xf32>
    %199 = arith.negf %198 : vector<8x96xf32>
    %200 = math.exp %199 : vector<8x96xf32>
    %cst_40 = arith.constant 1.000000e+00 : f32
    %201 = vector.broadcast %cst_40 : f32 to vector<8x96xf32>
    %202 = arith.addf %201, %200 : vector<8x96xf32>
    %203 = arith.divf %201, %202 : vector<8x96xf32>
    %204 = vector.extract_strided_slice %197 {offsets = [0, 96], sizes = [8, 32], strides = [1, 1]} : vector<8x128xf32> to vector<8x32xf32>
    %205 = math.tanh %204 : vector<8x32xf32>
    %206 = vector.extract_strided_slice %203 {offsets = [0, 0], sizes = [8, 32], strides = [1, 1]} : vector<8x96xf32> to vector<8x32xf32>
    %207 = vector.extract_strided_slice %203 {offsets = [0, 32], sizes = [8, 32], strides = [1, 1]} : vector<8x96xf32> to vector<8x32xf32>
    %208 = vector.extract_strided_slice %203 {offsets = [0, 64], sizes = [8, 32], strides = [1, 1]} : vector<8x96xf32> to vector<8x32xf32>
    %209 = arith.mulf %207, %172 : vector<8x32xf32>
    %210 = arith.mulf %206, %205 : vector<8x32xf32>
    %211 = arith.addf %209, %210 : vector<8x32xf32>
    %212 = math.tanh %211 : vector<8x32xf32>
    %213 = arith.mulf %208, %212 : vector<8x32xf32>
    %cst_41 = arith.constant dense<0.000000e+00> : vector<8x128xf32>
    %214 = tpu.matmul %194, %3, %cst_41 {dimension_numbers = #tpu.dot_dimension_numbers<[1], [0], [0], [1], [0, 0, 1, 1], [], []>} : vector<8x32xf32>, vector<32x128xf32>, vector<8x128xf32> -> vector<8x128xf32>
    %215 = arith.addf %214, %6 : vector<8x128xf32>
    %cst_42 = arith.constant dense<0.000000e+00> : vector<8x128xf32>
    %216 = tpu.matmul %213, %2, %cst_42 {dimension_numbers = #tpu.dot_dimension_numbers<[1], [0], [0], [1], [0, 0, 1, 1], [], []>} : vector<8x32xf32>, vector<32x128xf32>, vector<8x128xf32> -> vector<8x128xf32>
    %217 = arith.addf %215, %216 : vector<8x128xf32>
    %218 = vector.extract_strided_slice %217 {offsets = [0, 0], sizes = [8, 96], strides = [1, 1]} : vector<8x128xf32> to vector<8x96xf32>
    %219 = arith.negf %218 : vector<8x96xf32>
    %220 = math.exp %219 : vector<8x96xf32>
    %cst_43 = arith.constant 1.000000e+00 : f32
    %221 = vector.broadcast %cst_43 : f32 to vector<8x96xf32>
    %222 = arith.addf %221, %220 : vector<8x96xf32>
    %223 = arith.divf %221, %222 : vector<8x96xf32>
    %224 = vector.extract_strided_slice %217 {offsets = [0, 96], sizes = [8, 32], strides = [1, 1]} : vector<8x128xf32> to vector<8x32xf32>
    %225 = math.tanh %224 : vector<8x32xf32>
    %226 = vector.extract_strided_slice %223 {offsets = [0, 0], sizes = [8, 32], strides = [1, 1]} : vector<8x96xf32> to vector<8x32xf32>
    %227 = vector.extract_strided_slice %223 {offsets = [0, 32], sizes = [8, 32], strides = [1, 1]} : vector<8x96xf32> to vector<8x32xf32>
    %228 = vector.extract_strided_slice %223 {offsets = [0, 64], sizes = [8, 32], strides = [1, 1]} : vector<8x96xf32> to vector<8x32xf32>
    %229 = arith.mulf %227, %192 : vector<8x32xf32>
    %230 = arith.mulf %226, %225 : vector<8x32xf32>
    %231 = arith.addf %229, %230 : vector<8x32xf32>
    %232 = math.tanh %231 : vector<8x32xf32>
    %233 = arith.mulf %228, %232 : vector<8x32xf32>
    %c40 = arith.constant 40 : index
    %c0_44 = arith.constant 0 : index
    %234 = vector.load %arg3[%c40, %c0_44] : memref<64x32xf32, #tpu.memory_space<vmem>>, vector<8x32xf32>
    tpu.vector_store %arg3[%c40, %c0_44], %233 {strides = array<i32>} : memref<64x32xf32, #tpu.memory_space<vmem>>, vector<8x32xf32>,
    %cst_45 = arith.constant dense<0.000000e+00> : vector<8x128xf32>
    %235 = tpu.matmul %213, %1, %cst_45 {dimension_numbers = #tpu.dot_dimension_numbers<[1], [0], [0], [1], [0, 0, 1, 1], [], []>} : vector<8x32xf32>, vector<32x128xf32>, vector<8x128xf32> -> vector<8x128xf32>
    %236 = arith.addf %10, %235 : vector<8x128xf32>
    %237 = vector.extract_strided_slice %236 {offsets = [0, 0], sizes = [8, 96], strides = [1, 1]} : vector<8x128xf32> to vector<8x96xf32>
    %238 = arith.negf %237 : vector<8x96xf32>
    %239 = math.exp %238 : vector<8x96xf32>
    %cst_46 = arith.constant 1.000000e+00 : f32
    %240 = vector.broadcast %cst_46 : f32 to vector<8x96xf32>
    %241 = arith.addf %240, %239 : vector<8x96xf32>
    %242 = arith.divf %240, %241 : vector<8x96xf32>
    %243 = vector.extract_strided_slice %236 {offsets = [0, 96], sizes = [8, 32], strides = [1, 1]} : vector<8x128xf32> to vector<8x32xf32>
    %244 = math.tanh %243 : vector<8x32xf32>
    %245 = vector.extract_strided_slice %242 {offsets = [0, 0], sizes = [8, 32], strides = [1, 1]} : vector<8x96xf32> to vector<8x32xf32>
    %246 = vector.extract_strided_slice %242 {offsets = [0, 32], sizes = [8, 32], strides = [1, 1]} : vector<8x96xf32> to vector<8x32xf32>
    %247 = vector.extract_strided_slice %242 {offsets = [0, 64], sizes = [8, 32], strides = [1, 1]} : vector<8x96xf32> to vector<8x32xf32>
    %248 = arith.mulf %246, %211 : vector<8x32xf32>
    %249 = arith.mulf %245, %244 : vector<8x32xf32>
    %250 = arith.addf %248, %249 : vector<8x32xf32>
    %251 = math.tanh %250 : vector<8x32xf32>
    %252 = arith.mulf %247, %251 : vector<8x32xf32>
    %cst_47 = arith.constant dense<0.000000e+00> : vector<8x128xf32>
    %253 = tpu.matmul %233, %3, %cst_47 {dimension_numbers = #tpu.dot_dimension_numbers<[1], [0], [0], [1], [0, 0, 1, 1], [], []>} : vector<8x32xf32>, vector<32x128xf32>, vector<8x128xf32> -> vector<8x128xf32>
    %254 = arith.addf %253, %6 : vector<8x128xf32>
    %cst_48 = arith.constant dense<0.000000e+00> : vector<8x128xf32>
    %255 = tpu.matmul %252, %2, %cst_48 {dimension_numbers = #tpu.dot_dimension_numbers<[1], [0], [0], [1], [0, 0, 1, 1], [], []>} : vector<8x32xf32>, vector<32x128xf32>, vector<8x128xf32> -> vector<8x128xf32>
    %256 = arith.addf %254, %255 : vector<8x128xf32>
    %257 = vector.extract_strided_slice %256 {offsets = [0, 0], sizes = [8, 96], strides = [1, 1]} : vector<8x128xf32> to vector<8x96xf32>
    %258 = arith.negf %257 : vector<8x96xf32>
    %259 = math.exp %258 : vector<8x96xf32>
    %cst_49 = arith.constant 1.000000e+00 : f32
    %260 = vector.broadcast %cst_49 : f32 to vector<8x96xf32>
    %261 = arith.addf %260, %259 : vector<8x96xf32>
    %262 = arith.divf %260, %261 : vector<8x96xf32>
    %263 = vector.extract_strided_slice %256 {offsets = [0, 96], sizes = [8, 32], strides = [1, 1]} : vector<8x128xf32> to vector<8x32xf32>
    %264 = math.tanh %263 : vector<8x32xf32>
    %265 = vector.extract_strided_slice %262 {offsets = [0, 0], sizes = [8, 32], strides = [1, 1]} : vector<8x96xf32> to vector<8x32xf32>
    %266 = vector.extract_strided_slice %262 {offsets = [0, 32], sizes = [8, 32], strides = [1, 1]} : vector<8x96xf32> to vector<8x32xf32>
    %267 = vector.extract_strided_slice %262 {offsets = [0, 64], sizes = [8, 32], strides = [1, 1]} : vector<8x96xf32> to vector<8x32xf32>
    %268 = arith.mulf %266, %231 : vector<8x32xf32>
    %269 = arith.mulf %265, %264 : vector<8x32xf32>
    %270 = arith.addf %268, %269 : vector<8x32xf32>
    %271 = math.tanh %270 : vector<8x32xf32>
    %272 = arith.mulf %267, %271 : vector<8x32xf32>
    %c48 = arith.constant 48 : index
    %c0_50 = arith.constant 0 : index
    %273 = vector.load %arg3[%c48, %c0_50] : memref<64x32xf32, #tpu.memory_space<vmem>>, vector<8x32xf32>
    tpu.vector_store %arg3[%c48, %c0_50], %272 {strides = array<i32>} : memref<64x32xf32, #tpu.memory_space<vmem>>, vector<8x32xf32>,
    %cst_51 = arith.constant dense<0.000000e+00> : vector<8x128xf32>
    %274 = tpu.matmul %252, %1, %cst_51 {dimension_numbers = #tpu.dot_dimension_numbers<[1], [0], [0], [1], [0, 0, 1, 1], [], []>} : vector<8x32xf32>, vector<32x128xf32>, vector<8x128xf32> -> vector<8x128xf32>
    %275 = arith.addf %10, %274 : vector<8x128xf32>
    %276 = vector.extract_strided_slice %275 {offsets = [0, 0], sizes = [8, 96], strides = [1, 1]} : vector<8x128xf32> to vector<8x96xf32>
    %277 = arith.negf %276 : vector<8x96xf32>
    %278 = math.exp %277 : vector<8x96xf32>
    %cst_52 = arith.constant 1.000000e+00 : f32
    %279 = vector.broadcast %cst_52 : f32 to vector<8x96xf32>
    %280 = arith.addf %279, %278 : vector<8x96xf32>
    %281 = arith.divf %279, %280 : vector<8x96xf32>
    %282 = vector.extract_strided_slice %275 {offsets = [0, 96], sizes = [8, 32], strides = [1, 1]} : vector<8x128xf32> to vector<8x32xf32>
    %283 = math.tanh %282 : vector<8x32xf32>
    %284 = vector.extract_strided_slice %281 {offsets = [0, 0], sizes = [8, 32], strides = [1, 1]} : vector<8x96xf32> to vector<8x32xf32>
    %285 = vector.extract_strided_slice %281 {offsets = [0, 32], sizes = [8, 32], strides = [1, 1]} : vector<8x96xf32> to vector<8x32xf32>
    %286 = vector.extract_strided_slice %281 {offsets = [0, 64], sizes = [8, 32], strides = [1, 1]} : vector<8x96xf32> to vector<8x32xf32>
    %287 = arith.mulf %285, %250 : vector<8x32xf32>
    %288 = arith.mulf %284, %283 : vector<8x32xf32>
    %289 = arith.addf %287, %288 : vector<8x32xf32>
    %290 = math.tanh %289 : vector<8x32xf32>
    %291 = arith.mulf %286, %290 : vector<8x32xf32>
    %cst_53 = arith.constant dense<0.000000e+00> : vector<8x128xf32>
    %292 = tpu.matmul %272, %3, %cst_53 {dimension_numbers = #tpu.dot_dimension_numbers<[1], [0], [0], [1], [0, 0, 1, 1], [], []>} : vector<8x32xf32>, vector<32x128xf32>, vector<8x128xf32> -> vector<8x128xf32>
    %293 = arith.addf %292, %6 : vector<8x128xf32>
    %cst_54 = arith.constant dense<0.000000e+00> : vector<8x128xf32>
    %294 = tpu.matmul %291, %2, %cst_54 {dimension_numbers = #tpu.dot_dimension_numbers<[1], [0], [0], [1], [0, 0, 1, 1], [], []>} : vector<8x32xf32>, vector<32x128xf32>, vector<8x128xf32> -> vector<8x128xf32>
    %295 = arith.addf %293, %294 : vector<8x128xf32>
    %296 = vector.extract_strided_slice %295 {offsets = [0, 0], sizes = [8, 96], strides = [1, 1]} : vector<8x128xf32> to vector<8x96xf32>
    %297 = arith.negf %296 : vector<8x96xf32>
    %298 = math.exp %297 : vector<8x96xf32>
    %cst_55 = arith.constant 1.000000e+00 : f32
    %299 = vector.broadcast %cst_55 : f32 to vector<8x96xf32>
    %300 = arith.addf %299, %298 : vector<8x96xf32>
    %301 = arith.divf %299, %300 : vector<8x96xf32>
    %302 = vector.extract_strided_slice %295 {offsets = [0, 96], sizes = [8, 32], strides = [1, 1]} : vector<8x128xf32> to vector<8x32xf32>
    %303 = math.tanh %302 : vector<8x32xf32>
    %304 = vector.extract_strided_slice %301 {offsets = [0, 0], sizes = [8, 32], strides = [1, 1]} : vector<8x96xf32> to vector<8x32xf32>
    %305 = vector.extract_strided_slice %301 {offsets = [0, 32], sizes = [8, 32], strides = [1, 1]} : vector<8x96xf32> to vector<8x32xf32>
    %306 = vector.extract_strided_slice %301 {offsets = [0, 64], sizes = [8, 32], strides = [1, 1]} : vector<8x96xf32> to vector<8x32xf32>
    %307 = arith.mulf %305, %270 : vector<8x32xf32>
    %308 = arith.mulf %304, %303 : vector<8x32xf32>
    %309 = arith.addf %307, %308 : vector<8x32xf32>
    %310 = math.tanh %309 : vector<8x32xf32>
    %311 = arith.mulf %306, %310 : vector<8x32xf32>
    %c56 = arith.constant 56 : index
    %c0_56 = arith.constant 0 : index
    %312 = vector.load %arg3[%c56, %c0_56] : memref<64x32xf32, #tpu.memory_space<vmem>>, vector<8x32xf32>
    tpu.vector_store %arg3[%c56, %c0_56], %311 {strides = array<i32>} : memref<64x32xf32, #tpu.memory_space<vmem>>, vector<8x32xf32>,
    %c0_57 = arith.constant 0 : index
    %c0_58 = arith.constant 0 : index
    %313 = vector.load %arg3[%c0_57, %c0_58] : memref<64x32xf32, #tpu.memory_space<vmem>>, vector<64x32xf32>
    %cst_59 = arith.constant dense<0.000000e+00> : vector<64x128xf32>
    %314 = tpu.matmul %313, %4, %cst_59 {dimension_numbers = #tpu.dot_dimension_numbers<[1], [0], [0], [1], [0, 0, 1, 1], [], []>} : vector<64x32xf32>, vector<32x128xf32>, vector<64x128xf32> -> vector<64x128xf32>
    %315 = arith.addf %314, %7 : vector<64x128xf32>
    %316 = math.tanh %315 : vector<64x128xf32>
    %c0_60 = arith.constant 0 : index
    %c0_61 = arith.constant 0 : index
    %317 = vector.load %arg2[%c0_60, %c0_61] : memref<64x128xf32, #tpu.memory_space<vmem>>, vector<64x128xf32>
    tpu.vector_store %arg2[%c0_60, %c0_61], %316 {strides = array<i32>} : memref<64x128xf32, #tpu.memory_space<vmem>>, vector<64x128xf32>,
    return
  }
}

</mosaic_0001>

<llo_original>
// kernel: lstm_text_to_music_forward.1
$region0: #{lstm_text_to_music_forward.1}
  #allocation0 [shape = 'u32[]', space=smem, size = 0x4, offset = 0x4, fixed_abs, tag = 'smem constant byte address 0x4 - core index']
  #allocation1 [shape = 'u32[72,128]{1,0:T(1,128)}', space=vmem, size = 0x9000, scoped, tag = 'internal scratch']
  #allocation2 [shape = 'f32[64,32]{1,0:T(8,128)}', space=vmem, size = 0x8000, scoped, tag = 'scratch operand']
  %s0 = inlined_call_operand.vmem [shape: f32[8,128], index: 0, kind: input, shape index: {}]
  %s1 = inlined_call_operand.hbm [shape: f32[336,128], index: 1, kind: input, shape index: {}]
  %s2 = inlined_call_operand.vmem [shape: f32[64,128], index: 2, kind: output, shape index: {}]
  %s3 = sld [smem:[#allocation0]]
  $region22: #{lstm_text_to_music_forward.1} parent=0
    _
  %s5 = ssub.s32 1, %s3
  %s6 = scalar_select 0, %s5, %s3
  $region1: #{lstm_text_to_music_forward.1} parent=0
    #allocation3 [shape = 'u8[172032]{0}', space=vmem, size = 0x2a000, scoped, tag = 'input window, operand 1, single buffered']
    #allocation4 [shape = 's32[1]{0}', space=sflag, size = 0x4, scoped, tag = 'scoped memory for lstm_text_to_music_forward.1']
    %7 = vsyncpa [#allocation4], 0
    // Predicated region
    $region2: #{lstm_text_to_music_forward.1} parent=1 // pred_check
      _
    $region3: #{lstm_text_to_music_forward.1} parent=1 // pred_check_branch
      %9 = sbr.rel (0) target = $region5
    $region4: #{lstm_text_to_music_forward.1} parent=1 // pred_region
      _
    $region5: #{lstm_text_to_music_forward.1} parent=1 // pred_fallthru
      _
    // Predicated region
    $region6: #{lstm_text_to_music_forward.1} parent=1 // pred_check
      _
    $region7: #{lstm_text_to_music_forward.1} parent=1 // pred_check_branch
      %11 = sbr.rel (0) target = $region9
    $region8: #{lstm_text_to_music_forward.1} parent=1 // pred_region
      %13 = vsyncadd [#allocation4], 0
      %s14 = sshll.u32 %s1, 4
      %s15 = int_to_ptr.hbm [resolvable:$true] %s14
      %s16 = sshll.u32 [#allocation3], 4
      %s17 = int_to_ptr.vmem [resolvable:$true] %s16
      %22 = dma.hbm_to_vmem [thread:$0]  %s15, 5376, %s17, [#allocation4], 128, 128, 8
    $region9: #{lstm_text_to_music_forward.1} parent=1 // pred_fallthru
      _
    // Predicated region
    $region10: #{lstm_text_to_music_forward.1} parent=1 // pred_check
      _
    $region11: #{lstm_text_to_music_forward.1} parent=1 // pred_check_branch
      %24 = sbr.rel (0) target = $region13
    $region12: #{lstm_text_to_music_forward.1} parent=1 // pred_region
      %26 = dma.done [#allocation4], 5376
    $region13: #{lstm_text_to_music_forward.1} parent=1 // pred_fallthru
      _
    %v27 = vld [vmem:[#allocation3] sm:$0xff]
    %v28 = vld [vmem:[#allocation3 + $0x8] sm:$0xff]
    %v29 = vld [vmem:[#allocation3 + $0x10] sm:$0xff]
    %v30 = vld [vmem:[#allocation3 + $0x18] sm:$0xff]
    %v31 = vld [vmem:[#allocation3 + $0x20] sm:$0xff]
    %v32 = vld [vmem:[#allocation3 + $0x28] sm:$0xff]
    %v33 = vld [vmem:[#allocation3 + $0x30] sm:$0xff]
    %v34 = vld [vmem:[#allocation3 + $0x38] sm:$0xff]
    %v35 = vld [vmem:[#allocation3 + $0x40] sm:$0xff]
    %v36 = vld [vmem:[#allocation3 + $0x48] sm:$0xff]
    %v37 = vld [vmem:[#allocation3 + $0x50] sm:$0xff]
    %v38 = vld [vmem:[#allocation3 + $0x58] sm:$0xff]
    %v39 = vld [vmem:[#allocation3 + $0x60] sm:$0xff]
    %v40 = vld [vmem:[#allocation3 + $0x68] sm:$0xff]
    %v41 = vld [vmem:[#allocation3 + $0x70] sm:$0xff]
    %v42 = vld [vmem:[#allocation3 + $0x78] sm:$0xff]
    %v43 = vld [vmem:[#allocation3 + $0x80] sm:$0xff]
    %v44 = vld [vmem:[#allocation3 + $0x88] sm:$0xff]
    %v45 = vld [vmem:[#allocation3 + $0x90] sm:$0xff]
    %v46 = vld [vmem:[#allocation3 + $0x98] sm:$0xff]
    %v47 = vld [vmem:[#allocation3 + $0xa0] sm:$0xff]
    %v48 = vld [vmem:[#allocation3 + $0xa8] sm:$0xff]
    %v49 = vld [vmem:[#allocation3 + $0xb0] sm:$0xff]
    %v50 = vld [vmem:[#allocation3 + $0xb8] sm:$0xff]
    %v51 = vld [vmem:[#allocation3 + $0xc0] sm:$0xff]
    %v52 = vld [vmem:[#allocation3 + $0xc8] sm:$0xff]
    %v53 = vld [vmem:[#allocation3 + $0xd0] sm:$0xff]
    %v54 = vld [vmem:[#allocation3 + $0xd8] sm:$0xff]
    %v55 = vld [vmem:[#allocation3 + $0xe0] sm:$0xff]
    %v56 = vld [vmem:[#allocation3 + $0xe8] sm:$0xff]
    %v57 = vld [vmem:[#allocation3 + $0xf0] sm:$0xff]
    %v58 = vld [vmem:[#allocation3 + $0xf8] sm:$0xff]
    %v59 = vld [vmem:[#allocation3 + $0x100] sm:$0xff]
    %v60 = vld [vmem:[#allocation3 + $0x108] sm:$0xff]
    %v61 = vld [vmem:[#allocation3 + $0x110] sm:$0xff]
    %v62 = vld [vmem:[#allocation3 + $0x118] sm:$0xff]
    %v63 = vld [vmem:[#allocation3 + $0x120] sm:$0xff]
    %v64 = vld [vmem:[#allocation3 + $0x128] sm:$0xff]
    %v65 = vld [vmem:[#allocation3 + $0x130] sm:$0xff]
    %v66 = vld [vmem:[#allocation3 + $0x138] sm:$0xff]
    %v67 = vld [vmem:[#allocation3 + $0x140] sm:$0xff]
    %v68 = vld [vmem:[#allocation3 + $0x148] sm:$0xff]
    %v69 = vld [vmem:[%s0] sm:$0xff]
    %70 = vmatpush.msra.mxu0 %v42
    %71 = vmatpush.msra.mxu0 %v41
    %72 = vmatpush.msra.mxu0 %v40
    %73 = vmatpush.msra.mxu0 %v39
    %74 = vmatpush.msra.mxu0 %v38
    %75 = vmatpush.msra.mxu0 %v37
    %76 = vmatpush.msra.mxu0 %v36
    %77 = vmatpush.msra.mxu0 %v35
    %78 = vmatpush.msra.mxu0 %v34
    %79 = vmatpush.msra.mxu0 %v33
    %80 = vmatpush.msra.mxu0 %v32
    %81 = vmatpush.msra.mxu0 %v31
    %82 = vmatpush.msra.mxu0 %v30
    %83 = vmatpush.msra.mxu0 %v29
    %84 = vmatpush.msra.mxu0 %v28
    %85 = vmatpush.msra.mxu0 %v27
    %86 = vmatmul.f32.gmra.mxu0 %v69
    %v87 = vpop.f32.mrf.mxu0
    %v88 = vadd.f32 %v59, %v87
    %89 = vdwg.mxu0
    %v90 = vxor.u32 %v88, 2147483648
    %v91 = vmul.f32 %v90, 1.442695
    %v92 = vpow.pop %v91
    %v93 = vadd.f32 %v92, 1.0
    %v94 = vrcp.pop %v93
    %v95 = vmul.f32 %v93, %v94
    %v96 = vsub.f32 1.0, %v95
    %v97 = vmul.f32 %v94, %v96
    %v98 = vadd.f32 %v94, %v97
    %vm99 = vweird.f32 %v93
    %vm100 = vweird.f32 %v94
    %vm101 = vmor %vm99, %vm100
    %v102 = vsel %vm101, %v94, %v98
    %v103 = vand.u32 2147483647, %v93
    %vm104 = vcmp.eq.f32.partialorder %v103, 8.507059e+37
    %v105 = vand.u32 %v93, 2147483648
    %v106 = vor.u32 1.1754944e-38, %v105
    %v107 = vsel %vm104, %v106, %v102
    %v108 = vmul.f32 1.0, %v107
    %v109 = vtanh.pop %v88
    %111 = vrot.lane.b32.xlu0 %v109, 32
    %v112 = vpop.permute.xlu0 %111
    %v114 = vmul.f32 %v108, %v112
    %v115 = vtanh.pop %v114
    %117 = vrot.lane.b32.xlu0 %v115, 64
    %v118 = vpop.permute.xlu0 %117
    %v120 = vmul.f32 %v108, %v118
    %122 = vrot.lane.b32.xlu0 %v120, 64
    %v123 = vpop.permute.xlu0 %122
    %vm124 = vcmask 261120
    %v125 = vsel %vm124, %v123, 0
    %127 = vmatpush.msra.mxu0 0.0
    %128 = vmatpush.msra.mxu0 0.0
    %129 = vmatpush.msra.mxu0 0.0
    %130 = vmatpush.msra.mxu0 0.0
    %131 = vmatpush.msra.mxu0 0.0
    %132 = vmatpush.msra.mxu0 0.0
    %133 = vmatpush.msra.mxu0 0.0
    %134 = vmatpush.msra.mxu0 0.0
    %135 = vmatpush.msra.mxu0 0.0
    %136 = vmatpush.msra.mxu0 0.0
    %137 = vmatpush.msra.mxu0 0.0
    %138 = vmatpush.msra.mxu0 0.0
    %139 = vmatpush.msra.mxu0 %v50
    %140 = vmatpush.msra.mxu0 %v49
    %141 = vmatpush.msra.mxu0 %v48
    %142 = vmatpush.msra.mxu0 %v47
    %143 = vmatmul.f32.gmra.mxu0 %v125
    %v144 = vpop.f32.mrf.mxu0
    %v145 = vadd.f32 %v60, %v144
    %146 = vdwg.mxu0
    %v147 = vxor.u32 %v145, 2147483648
    %v148 = vmul.f32 %v147, 1.442695
    %v149 = vpow.pop %v148
    %v150 = vadd.f32 %v149, 1.0
    %v151 = vrcp.pop %v150
    %v152 = vmul.f32 %v150, %v151
    %v153 = vsub.f32 1.0, %v152
    %v154 = vmul.f32 %v151, %v153
    %v155 = vadd.f32 %v151, %v154
    %vm156 = vweird.f32 %v150
    %vm157 = vweird.f32 %v151
    %vm158 = vmor %vm156, %vm157
    %v159 = vsel %vm158, %v151, %v155
    %v160 = vand.u32 2147483647, %v150
    %vm161 = vcmp.eq.f32.partialorder %v160, 8.507059e+37
    %v162 = vand.u32 %v150, 2147483648
    %v163 = vor.u32 1.1754944e-38, %v162
    %v164 = vsel %vm161, %v163, %v159
    %v165 = vmul.f32 1.0, %v164
    %v166 = vtanh.pop %v145
    %168 = vrot.lane.b32.xlu0 %v166, 32
    %v169 = vpop.permute.xlu0 %168
    %v171 = vmul.f32 %v165, %v169
    %v172 = vtanh.pop %v171
    %174 = vrot.lane.b32.xlu0 %v172, 64
    %v175 = vpop.permute.xlu0 %174
    %v177 = vmul.f32 %v165, %v175
    %179 = vrot.lane.b32.xlu0 %v177, 64
    %v180 = vpop.permute.xlu0 %179
    %182 = vst.msk [vmem:[#allocation2] sm:$0xff] %vm124, %v180
    %183 = vmatpush.msra.mxu0 0.0
    %184 = vmatpush.msra.mxu0 0.0
    %185 = vmatpush.msra.mxu0 0.0
    %186 = vmatpush.msra.mxu0 0.0
    %187 = vmatpush.msra.mxu0 0.0
    %188 = vmatpush.msra.mxu0 0.0
    %189 = vmatpush.msra.mxu0 0.0
    %190 = vmatpush.msra.mxu0 0.0
    %191 = vmatpush.msra.mxu0 0.0
    %192 = vmatpush.msra.mxu0 0.0
    %193 = vmatpush.msra.mxu0 0.0
    %194 = vmatpush.msra.mxu0 0.0
    %195 = vmatpush.msra.mxu0 %v46
    %196 = vmatpush.msra.mxu0 %v45
    %197 = vmatpush.msra.mxu0 %v44
    %198 = vmatpush.msra.mxu0 %v43
    %199 = vmatmul.f32.gmra.mxu0 %v125
    %v200 = vpop.f32.mrf.mxu0
    %v201 = vadd.f32 0.0, %v200
    %202 = vdwg.mxu0
    %v203 = vadd.f32 %v88, %v201
    %v204 = vxor.u32 %v203, 2147483648
    %v205 = vmul.f32 %v204, 1.442695
    %v206 = vpow.pop %v205
    %v207 = vadd.f32 %v206, 1.0
    %v208 = vrcp.pop %v207
    %v209 = vmul.f32 %v207, %v208
    %v210 = vsub.f32 1.0, %v209
    %v211 = vmul.f32 %v208, %v210
    %v212 = vadd.f32 %v208, %v211
    %vm213 = vweird.f32 %v207
    %vm214 = vweird.f32 %v208
    %vm215 = vmor %vm213, %vm214
    %v216 = vsel %vm215, %v208, %v212
    %v217 = vand.u32 2147483647, %v207
    %vm218 = vcmp.eq.f32.partialorder %v217, 8.507059e+37
    %v219 = vand.u32 %v207, 2147483648
    %v220 = vor.u32 1.1754944e-38, %v219
    %v221 = vsel %vm218, %v220, %v216
    %v222 = vmul.f32 1.0, %v221
    %v223 = vtanh.pop %v203
    %225 = vrot.lane.b32.xlu0 %v114, 32
    %v226 = vpop.permute.xlu0 %225
    %v228 = vmul.f32 %v222, %v226
    %230 = vrot.lane.b32.xlu0 %v223, 32
    %v231 = vpop.permute.xlu0 %230
    %v233 = vmul.f32 %v222, %v231
    %235 = vrot.lane.b32.xlu0 %v233, 32
    %v236 = vpop.permute.xlu0 %235
    %v238 = vadd.f32 %v228, %v236
    %v239 = vtanh.pop %v238
    %241 = vrot.lane.b32.xlu0 %v239, 32
    %v242 = vpop.permute.xlu0 %241
    %v244 = vmul.f32 %v222, %v242
    %v245 = vsel %vm124, %v180, 0
    %247 = vmatpush.msra.mxu0 0.0
    %248 = vmatpush.msra.mxu0 0.0
    %249 = vmatpush.msra.mxu0 0.0
    %250 = vmatpush.msra.mxu0 0.0
    %251 = vmatpush.msra.mxu0 0.0
    %252 = vmatpush.msra.mxu0 0.0
    %253 = vmatpush.msra.mxu0 0.0
    %254 = vmatpush.msra.mxu0 0.0
    %255 = vmatpush.msra.mxu0 0.0
    %256 = vmatpush.msra.mxu0 0.0
    %257 = vmatpush.msra.mxu0 0.0
    %258 = vmatpush.msra.mxu0 0.0
    %259 = vmatpush.msra.mxu0 %v54
    %260 = vmatpush.msra.mxu0 %v53
    %261 = vmatpush.msra.mxu0 %v52
    %262 = vmatpush.msra.mxu0 %v51
    %263 = vmatmul.f32.gmra.mxu0 %v245
    %v264 = vpop.f32.mrf.mxu0
    %v265 = vadd.f32 %v60, %v264
    %266 = vdwg.mxu0
    %268 = vrot.lane.b32.xlu0 %v244, 64
    %v269 = vpop.permute.xlu0 %268
    %v270 = vsel %vm124, %v269, 0
    %272 = vmatpush.msra.mxu0 0.0
    %273 = vmatpush.msra.mxu0 0.0
    %274 = vmatpush.msra.mxu0 0.0
    %275 = vmatpush.msra.mxu0 0.0
    %276 = vmatpush.msra.mxu0 0.0
    %277 = vmatpush.msra.mxu0 0.0
    %278 = vmatpush.msra.mxu0 0.0
    %279 = vmatpush.msra.mxu0 0.0
    %280 = vmatpush.msra.mxu0 0.0
    %281 = vmatpush.msra.mxu0 0.0
    %282 = vmatpush.msra.mxu0 0.0
    %283 = vmatpush.msra.mxu0 0.0
    %284 = vmatpush.msra.mxu0 %v50
    %285 = vmatpush.msra.mxu0 %v49
    %286 = vmatpush.msra.mxu0 %v48
    %287 = vmatpush.msra.mxu0 %v47
    %288 = vmatmul.f32.gmra.mxu0 %v270
    %v289 = vpop.f32.mrf.mxu0
    %v290 = vadd.f32 0.0, %v289
    %291 = vdwg.mxu0
    %v292 = vadd.f32 %v265, %v290
    %v293 = vxor.u32 %v292, 2147483648
    %v294 = vmul.f32 %v293, 1.442695
    %v295 = vpow.pop %v294
    %v296 = vadd.f32 %v295, 1.0
    %v297 = vrcp.pop %v296
    %v298 = vmul.f32 %v296, %v297
    %v299 = vsub.f32 1.0, %v298
    %v300 = vmul.f32 %v297, %v299
    %v301 = vadd.f32 %v297, %v300
    %vm302 = vweird.f32 %v296
    %vm303 = vweird.f32 %v297
    %vm304 = vmor %vm302, %vm303
    %v305 = vsel %vm304, %v297, %v301
    %v306 = vand.u32 2147483647, %v296
    %vm307 = vcmp.eq.f32.partialorder %v306, 8.507059e+37
    %v308 = vand.u32 %v296, 2147483648
    %v309 = vor.u32 1.1754944e-38, %v308
    %v310 = vsel %vm307, %v309, %v305
    %v311 = vmul.f32 1.0, %v310
    %v312 = vtanh.pop %v292
    %314 = vrot.lane.b32.xlu0 %v171, 32
    %v315 = vpop.permute.xlu0 %314
    %v317 = vmul.f32 %v311, %v315
    %319 = vrot.lane.b32.xlu0 %v312, 32
    %v320 = vpop.permute.xlu0 %319
    %v322 = vmul.f32 %v311, %v320
    %324 = vrot.lane.b32.xlu0 %v322, 32
    %v325 = vpop.permute.xlu0 %324
    %v327 = vadd.f32 %v317, %v325
    %v328 = vtanh.pop %v327
    %330 = vrot.lane.b32.xlu0 %v328, 32
    %v331 = vpop.permute.xlu0 %330
    %v333 = vmul.f32 %v311, %v331
    %335 = vrot.lane.b32.xlu0 %v333, 64
    %v336 = vpop.permute.xlu0 %335
    %338 = vst.msk [vmem:[#allocation2 + $0x8] sm:$0xff] %vm124, %v336
    %339 = vmatpush.msra.mxu0 0.0
    %340 = vmatpush.msra.mxu0 0.0
    %341 = vmatpush.msra.mxu0 0.0
    %342 = vmatpush.msra.mxu0 0.0
    %343 = vmatpush.msra.mxu0 0.0
    %344 = vmatpush.msra.mxu0 0.0
    %345 = vmatpush.msra.mxu0 0.0
    %346 = vmatpush.msra.mxu0 0.0
    %347 = vmatpush.msra.mxu0 0.0
    %348 = vmatpush.msra.mxu0 0.0
    %349 = vmatpush.msra.mxu0 0.0
    %350 = vmatpush.msra.mxu0 0.0
    %351 = vmatpush.msra.mxu0 %v46
    %352 = vmatpush.msra.mxu0 %v45
    %353 = vmatpush.msra.mxu0 %v44
    %354 = vmatpush.msra.mxu0 %v43
    %355 = vmatmul.f32.gmra.mxu0 %v270
    %v356 = vpop.f32.mrf.mxu0
    %v357 = vadd.f32 0.0, %v356
    %358 = vdwg.mxu0
    %v359 = vadd.f32 %v88, %v357
    %v360 = vxor.u32 %v359, 2147483648
    %v361 = vmul.f32 %v360, 1.442695
    %v362 = vpow.pop %v361
    %v363 = vadd.f32 %v362, 1.0
    %v364 = vrcp.pop %v363
    %v365 = vmul.f32 %v363, %v364
    %v366 = vsub.f32 1.0, %v365
    %v367 = vmul.f32 %v364, %v366
    %v368 = vadd.f32 %v364, %v367
    %vm369 = vweird.f32 %v363
    %vm370 = vweird.f32 %v364
    %vm371 = vmor %vm369, %vm370
    %v372 = vsel %vm371, %v364, %v368
    %v373 = vand.u32 2147483647, %v363
    %vm374 = vcmp.eq.f32.partialorder %v373, 8.507059e+37
    %v375 = vand.u32 %v363, 2147483648
    %v376 = vor.u32 1.1754944e-38, %v375
    %v377 = vsel %vm374, %v376, %v372
    %v378 = vmul.f32 1.0, %v377
    %v379 = vtanh.pop %v359
    %v380 = vmul.f32 %v378, %v238
    %382 = vrot.lane.b32.xlu0 %v379, 32
    %v383 = vpop.permute.xlu0 %382
    %v385 = vmul.f32 %v378, %v383
    %387 = vrot.lane.b32.xlu0 %v385, 32
    %v388 = vpop.permute.xlu0 %387
    %v390 = vadd.f32 %v380, %v388
    %v391 = vtanh.pop %v390
    %393 = vrot.lane.b32.xlu0 %v391, 32
    %v394 = vpop.permute.xlu0 %393
    %v396 = vmul.f32 %v378, %v394
    %v397 = vsel %vm124, %v336, 0
    %399 = vmatpush.msra.mxu0 0.0
    %400 = vmatpush.msra.mxu0 0.0
    %401 = vmatpush.msra.mxu0 0.0
    %402 = vmatpush.msra.mxu0 0.0
    %403 = vmatpush.msra.mxu0 0.0
    %404 = vmatpush.msra.mxu0 0.0
    %405 = vmatpush.msra.mxu0 0.0
    %406 = vmatpush.msra.mxu0 0.0
    %407 = vmatpush.msra.mxu0 0.0
    %408 = vmatpush.msra.mxu0 0.0
    %409 = vmatpush.msra.mxu0 0.0
    %410 = vmatpush.msra.mxu0 0.0
    %411 = vmatpush.msra.mxu0 %v54
    %412 = vmatpush.msra.mxu0 %v53
    %413 = vmatpush.msra.mxu0 %v52
    %414 = vmatpush.msra.mxu0 %v51
    %415 = vmatmul.f32.gmra.mxu0 %v397
    %v416 = vpop.f32.mrf.mxu0
    %v417 = vadd.f32 %v60, %v416
    %418 = vdwg.mxu0
    %420 = vrot.lane.b32.xlu0 %v396, 64
    %v421 = vpop.permute.xlu0 %420
    %v422 = vsel %vm124, %v421, 0
    %424 = vmatpush.msra.mxu0 0.0
    %425 = vmatpush.msra.mxu0 0.0
    %426 = vmatpush.msra.mxu0 0.0
    %427 = vmatpush.msra.mxu0 0.0
    %428 = vmatpush.msra.mxu0 0.0
    %429 = vmatpush.msra.mxu0 0.0
    %430 = vmatpush.msra.mxu0 0.0
    %431 = vmatpush.msra.mxu0 0.0
    %432 = vmatpush.msra.mxu0 0.0
    %433 = vmatpush.msra.mxu0 0.0
    %434 = vmatpush.msra.mxu0 0.0
    %435 = vmatpush.msra.mxu0 0.0
    %436 = vmatpush.msra.mxu0 %v50
    %437 = vmatpush.msra.mxu0 %v49
    %438 = vmatpush.msra.mxu0 %v48
    %439 = vmatpush.msra.mxu0 %v47
    %440 = vmatmul.f32.gmra.mxu0 %v422
    %v441 = vpop.f32.mrf.mxu0
    %v442 = vadd.f32 0.0, %v441
    %443 = vdwg.mxu0
    %v444 = vadd.f32 %v417, %v442
    %v445 = vxor.u32 %v444, 2147483648
    %v446 = vmul.f32 %v445, 1.442695
    %v447 = vpow.pop %v446
    %v448 = vadd.f32 %v447, 1.0
    %v449 = vrcp.pop %v448
    %v450 = vmul.f32 %v448, %v449
    %v451 = vsub.f32 1.0, %v450
    %v452 = vmul.f32 %v449, %v451
    %v453 = vadd.f32 %v449, %v452
    %vm454 = vweird.f32 %v448
    %vm455 = vweird.f32 %v449
    %vm456 = vmor %vm454, %vm455
    %v457 = vsel %vm456, %v449, %v453
    %v458 = vand.u32 2147483647, %v448
    %vm459 = vcmp.eq.f32.partialorder %v458, 8.507059e+37
    %v460 = vand.u32 %v448, 2147483648
    %v461 = vor.u32 1.1754944e-38, %v460
    %v462 = vsel %vm459, %v461, %v457
    %v463 = vmul.f32 1.0, %v462
    %v464 = vtanh.pop %v444
    %v465 = vmul.f32 %v463, %v327
    %467 = vrot.lane.b32.xlu0 %v464, 32
    %v468 = vpop.permute.xlu0 %467
    %v470 = vmul.f32 %v463, %v468
    %472 = vrot.lane.b32.xlu0 %v470, 32
    %v473 = vpop.permute.xlu0 %472
    %v475 = vadd.f32 %v465, %v473
    %v476 = vtanh.pop %v475
    %478 = vrot.lane.b32.xlu0 %v476, 32
    %v479 = vpop.permute.xlu0 %478
    %v481 = vmul.f32 %v463, %v479
    %483 = vrot.lane.b32.xlu0 %v481, 64
    %v484 = vpop.permute.xlu0 %483
    %486 = vst.msk [vmem:[#allocation2 + $0x10] sm:$0xff] %vm124, %v484
    %487 = vmatpush.msra.mxu0 0.0
    %488 = vmatpush.msra.mxu0 0.0
    %489 = vmatpush.msra.mxu0 0.0
    %490 = vmatpush.msra.mxu0 0.0
    %491 = vmatpush.msra.mxu0 0.0
    %492 = vmatpush.msra.mxu0 0.0
    %493 = vmatpush.msra.mxu0 0.0
    %494 = vmatpush.msra.mxu0 0.0
    %495 = vmatpush.msra.mxu0 0.0
    %496 = vmatpush.msra.mxu0 0.0
    %497 = vmatpush.msra.mxu0 0.0
    %498 = vmatpush.msra.mxu0 0.0
    %499 = vmatpush.msra.mxu0 %v46
    %500 = vmatpush.msra.mxu0 %v45
    %501 = vmatpush.msra.mxu0 %v44
    %502 = vmatpush.msra.mxu0 %v43
    %503 = vmatmul.f32.gmra.mxu0 %v422
    %v504 = vpop.f32.mrf.mxu0
    %v505 = vadd.f32 0.0, %v504
    %506 = vdwg.mxu0
    %v507 = vadd.f32 %v88, %v505
    %v508 = vxor.u32 %v507, 2147483648
    %v509 = vmul.f32 %v508, 1.442695
    %v510 = vpow.pop %v509
    %v511 = vadd.f32 %v510, 1.0
    %v512 = vrcp.pop %v511
    %v513 = vmul.f32 %v511, %v512
    %v514 = vsub.f32 1.0, %v513
    %v515 = vmul.f32 %v512, %v514
    %v516 = vadd.f32 %v512, %v515
    %vm517 = vweird.f32 %v511
    %vm518 = vweird.f32 %v512
    %vm519 = vmor %vm517, %vm518
    %v520 = vsel %vm519, %v512, %v516
    %v521 = vand.u32 2147483647, %v511
    %vm522 = vcmp.eq.f32.partialorder %v521, 8.507059e+37
    %v523 = vand.u32 %v511, 2147483648
    %v524 = vor.u32 1.1754944e-38, %v523
    %v525 = vsel %vm522, %v524, %v520
    %v526 = vmul.f32 1.0, %v525
    %v527 = vtanh.pop %v507
    %v528 = vmul.f32 %v526, %v390
    %530 = vrot.lane.b32.xlu0 %v527, 32
    %v531 = vpop.permute.xlu0 %530
    %v533 = vmul.f32 %v526, %v531
    %535 = vrot.lane.b32.xlu0 %v533, 32
    %v536 = vpop.permute.xlu0 %535
    %v538 = vadd.f32 %v528, %v536
    %v539 = vtanh.pop %v538
    %541 = vrot.lane.b32.xlu0 %v539, 32
    %v542 = vpop.permute.xlu0 %541
    %v544 = vmul.f32 %v526, %v542
    %v545 = vsel %vm124, %v484, 0
    %547 = vmatpush.msra.mxu0 0.0
    %548 = vmatpush.msra.mxu0 0.0
    %549 = vmatpush.msra.mxu0 0.0
    %550 = vmatpush.msra.mxu0 0.0
    %551 = vmatpush.msra.mxu0 0.0
    %552 = vmatpush.msra.mxu0 0.0
    %553 = vmatpush.msra.mxu0 0.0
    %554 = vmatpush.msra.mxu0 0.0
    %555 = vmatpush.msra.mxu0 0.0
    %556 = vmatpush.msra.mxu0 0.0
    %557 = vmatpush.msra.mxu0 0.0
    %558 = vmatpush.msra.mxu0 0.0
    %559 = vmatpush.msra.mxu0 %v54
    %560 = vmatpush.msra.mxu0 %v53
    %561 = vmatpush.msra.mxu0 %v52
    %562 = vmatpush.msra.mxu0 %v51
    %563 = vmatmul.f32.gmra.mxu0 %v545
    %v564 = vpop.f32.mrf.mxu0
    %v565 = vadd.f32 %v60, %v564
    %566 = vdwg.mxu0
    %568 = vrot.lane.b32.xlu0 %v544, 64
    %v569 = vpop.permute.xlu0 %568
    %v570 = vsel %vm124, %v569, 0
    %572 = vmatpush.msra.mxu0 0.0
    %573 = vmatpush.msra.mxu0 0.0
    %574 = vmatpush.msra.mxu0 0.0
    %575 = vmatpush.msra.mxu0 0.0
    %576 = vmatpush.msra.mxu0 0.0
    %577 = vmatpush.msra.mxu0 0.0
    %578 = vmatpush.msra.mxu0 0.0
    %579 = vmatpush.msra.mxu0 0.0
    %580 = vmatpush.msra.mxu0 0.0
    %581 = vmatpush.msra.mxu0 0.0
    %582 = vmatpush.msra.mxu0 0.0
    %583 = vmatpush.msra.mxu0 0.0
    %584 = vmatpush.msra.mxu0 %v50
    %585 = vmatpush.msra.mxu0 %v49
    %586 = vmatpush.msra.mxu0 %v48
    %587 = vmatpush.msra.mxu0 %v47
    %588 = vmatmul.f32.gmra.mxu0 %v570
    %v589 = vpop.f32.mrf.mxu0
    %v590 = vadd.f32 0.0, %v589
    %591 = vdwg.mxu0
    %v592 = vadd.f32 %v565, %v590
    %v593 = vxor.u32 %v592, 2147483648
    %v594 = vmul.f32 %v593, 1.442695
    %v595 = vpow.pop %v594
    %v596 = vadd.f32 %v595, 1.0
    %v597 = vrcp.pop %v596
    %v598 = vmul.f32 %v596, %v597
    %v599 = vsub.f32 1.0, %v598
    %v600 = vmul.f32 %v597, %v599
    %v601 = vadd.f32 %v597, %v600
    %vm602 = vweird.f32 %v596
    %vm603 = vweird.f32 %v597
    %vm604 = vmor %vm602, %vm603
    %v605 = vsel %vm604, %v597, %v601
    %v606 = vand.u32 2147483647, %v596
    %vm607 = vcmp.eq.f32.partialorder %v606, 8.507059e+37
    %v608 = vand.u32 %v596, 2147483648
    %v609 = vor.u32 1.1754944e-38, %v608
    %v610 = vsel %vm607, %v609, %v605
    %v611 = vmul.f32 1.0, %v610
    %v612 = vtanh.pop %v592
    %v613 = vmul.f32 %v611, %v475
    %615 = vrot.lane.b32.xlu0 %v612, 32
    %v616 = vpop.permute.xlu0 %615
    %v618 = vmul.f32 %v611, %v616
    %620 = vrot.lane.b32.xlu0 %v618, 32
    %v621 = vpop.permute.xlu0 %620
    %v623 = vadd.f32 %v613, %v621
    %v624 = vtanh.pop %v623
    %626 = vrot.lane.b32.xlu0 %v624, 32
    %v627 = vpop.permute.xlu0 %626
    %v629 = vmul.f32 %v611, %v627
    %631 = vrot.lane.b32.xlu0 %v629, 64
    %v632 = vpop.permute.xlu0 %631
    %634 = vst.msk [vmem:[#allocation2 + $0x18] sm:$0xff] %vm124, %v632
    %635 = vmatpush.msra.mxu0 0.0
    %636 = vmatpush.msra.mxu0 0.0
    %637 = vmatpush.msra.mxu0 0.0
    %638 = vmatpush.msra.mxu0 0.0
    %639 = vmatpush.msra.mxu0 0.0
    %640 = vmatpush.msra.mxu0 0.0
    %641 = vmatpush.msra.mxu0 0.0
    %642 = vmatpush.msra.mxu0 0.0
    %643 = vmatpush.msra.mxu0 0.0
    %644 = vmatpush.msra.mxu0 0.0
    %645 = vmatpush.msra.mxu0 0.0
    %646 = vmatpush.msra.mxu0 0.0
    %647 = vmatpush.msra.mxu0 %v46
    %648 = vmatpush.msra.mxu0 %v45
    %649 = vmatpush.msra.mxu0 %v44
    %650 = vmatpush.msra.mxu0 %v43
    %651 = vmatmul.f32.gmra.mxu0 %v570
    %v652 = vpop.f32.mrf.mxu0
    %v653 = vadd.f32 0.0, %v652
    %654 = vdwg.mxu0
    %v655 = vadd.f32 %v88, %v653
    %v656 = vxor.u32 %v655, 2147483648
    %v657 = vmul.f32 %v656, 1.442695
    %v658 = vpow.pop %v657
    %v659 = vadd.f32 %v658, 1.0
    %v660 = vrcp.pop %v659
    %v661 = vmul.f32 %v659, %v660
    %v662 = vsub.f32 1.0, %v661
    %v663 = vmul.f32 %v660, %v662
    %v664 = vadd.f32 %v660, %v663
    %vm665 = vweird.f32 %v659
    %vm666 = vweird.f32 %v660
    %vm667 = vmor %vm665, %vm666
    %v668 = vsel %vm667, %v660, %v664
    %v669 = vand.u32 2147483647, %v659
    %vm670 = vcmp.eq.f32.partialorder %v669, 8.507059e+37
    %v671 = vand.u32 %v659, 2147483648
    %v672 = vor.u32 1.1754944e-38, %v671
    %v673 = vsel %vm670, %v672, %v668
    %v674 = vmul.f32 1.0, %v673
    %v675 = vtanh.pop %v655
    %v676 = vmul.f32 %v674, %v538
    %678 = vrot.lane.b32.xlu0 %v675, 32
    %v679 = vpop.permute.xlu0 %678
    %v681 = vmul.f32 %v674, %v679
    %683 = vrot.lane.b32.xlu0 %v681, 32
    %v684 = vpop.permute.xlu0 %683
    %v686 = vadd.f32 %v676, %v684
    %v687 = vtanh.pop %v686
    %689 = vrot.lane.b32.xlu0 %v687, 32
    %v690 = vpop.permute.xlu0 %689
    %v692 = vmul.f32 %v674, %v690
    %v693 = vsel %vm124, %v632, 0
    %695 = vmatpush.msra.mxu0 0.0
    %696 = vmatpush.msra.mxu0 0.0
    %697 = vmatpush.msra.mxu0 0.0
    %698 = vmatpush.msra.mxu0 0.0
    %699 = vmatpush.msra.mxu0 0.0
    %700 = vmatpush.msra.mxu0 0.0
    %701 = vmatpush.msra.mxu0 0.0
    %702 = vmatpush.msra.mxu0 0.0
    %703 = vmatpush.msra.mxu0 0.0
    %704 = vmatpush.msra.mxu0 0.0
    %705 = vmatpush.msra.mxu0 0.0
    %706 = vmatpush.msra.mxu0 0.0
    %707 = vmatpush.msra.mxu0 %v54
    %708 = vmatpush.msra.mxu0 %v53
    %709 = vmatpush.msra.mxu0 %v52
    %710 = vmatpush.msra.mxu0 %v51
    %711 = vmatmul.f32.gmra.mxu0 %v693
    %v712 = vpop.f32.mrf.mxu0
    %v713 = vadd.f32 %v60, %v712
    %714 = vdwg.mxu0
    %716 = vrot.lane.b32.xlu0 %v692, 64
    %v717 = vpop.permute.xlu0 %716
    %v718 = vsel %vm124, %v717, 0
    %720 = vmatpush.msra.mxu0 0.0
    %721 = vmatpush.msra.mxu0 0.0
    %722 = vmatpush.msra.mxu0 0.0
    %723 = vmatpush.msra.mxu0 0.0
    %724 = vmatpush.msra.mxu0 0.0
    %725 = vmatpush.msra.mxu0 0.0
    %726 = vmatpush.msra.mxu0 0.0
    %727 = vmatpush.msra.mxu0 0.0
    %728 = vmatpush.msra.mxu0 0.0
    %729 = vmatpush.msra.mxu0 0.0
    %730 = vmatpush.msra.mxu0 0.0
    %731 = vmatpush.msra.mxu0 0.0
    %732 = vmatpush.msra.mxu0 %v50
    %733 = vmatpush.msra.mxu0 %v49
    %734 = vmatpush.msra.mxu0 %v48
    %735 = vmatpush.msra.mxu0 %v47
    %736 = vmatmul.f32.gmra.mxu0 %v718
    %v737 = vpop.f32.mrf.mxu0
    %v738 = vadd.f32 0.0, %v737
    %739 = vdwg.mxu0
    %v740 = vadd.f32 %v713, %v738
    %v741 = vxor.u32 %v740, 2147483648
    %v742 = vmul.f32 %v741, 1.442695
    %v743 = vpow.pop %v742
    %v744 = vadd.f32 %v743, 1.0
    %v745 = vrcp.pop %v744
    %v746 = vmul.f32 %v744, %v745
    %v747 = vsub.f32 1.0, %v746
    %v748 = vmul.f32 %v745, %v747
    %v749 = vadd.f32 %v745, %v748
    %vm750 = vweird.f32 %v744
    %vm751 = vweird.f32 %v745
    %vm752 = vmor %vm750, %vm751
    %v753 = vsel %vm752, %v745, %v749
    %v754 = vand.u32 2147483647, %v744
    %vm755 = vcmp.eq.f32.partialorder %v754, 8.507059e+37
    %v756 = vand.u32 %v744, 2147483648
    %v757 = vor.u32 1.1754944e-38, %v756
    %v758 = vsel %vm755, %v757, %v753
    %v759 = vmul.f32 1.0, %v758
    %v760 = vtanh.pop %v740
    %v761 = vmul.f32 %v759, %v623
    %763 = vrot.lane.b32.xlu0 %v760, 32
    %v764 = vpop.permute.xlu0 %763
    %v766 = vmul.f32 %v759, %v764
    %768 = vrot.lane.b32.xlu0 %v766, 32
    %v769 = vpop.permute.xlu0 %768
    %v771 = vadd.f32 %v761, %v769
    %v772 = vtanh.pop %v771
    %774 = vrot.lane.b32.xlu0 %v772, 32
    %v775 = vpop.permute.xlu0 %774
    %v777 = vmul.f32 %v759, %v775
    %779 = vrot.lane.b32.xlu0 %v777, 64
    %v780 = vpop.permute.xlu0 %779
    %782 = vst.msk [vmem:[#allocation2 + $0x20] sm:$0xff] %vm124, %v780
    %783 = vmatpush.msra.mxu0 0.0
    %784 = vmatpush.msra.mxu0 0.0
    %785 = vmatpush.msra.mxu0 0.0
    %786 = vmatpush.msra.mxu0 0.0
    %787 = vmatpush.msra.mxu0 0.0
    %788 = vmatpush.msra.mxu0 0.0
    %789 = vmatpush.msra.mxu0 0.0
    %790 = vmatpush.msra.mxu0 0.0
    %791 = vmatpush.msra.mxu0 0.0
    %792 = vmatpush.msra.mxu0 0.0
    %793 = vmatpush.msra.mxu0 0.0
    %794 = vmatpush.msra.mxu0 0.0
    %795 = vmatpush.msra.mxu0 %v46
    %796 = vmatpush.msra.mxu0 %v45
    %797 = vmatpush.msra.mxu0 %v44
    %798 = vmatpush.msra.mxu0 %v43
    %799 = vmatmul.f32.gmra.mxu0 %v718
    %v800 = vpop.f32.mrf.mxu0
    %v801 = vadd.f32 0.0, %v800
    %802 = vdwg.mxu0
    %v803 = vadd.f32 %v88, %v801
    %v804 = vxor.u32 %v803, 2147483648
    %v805 = vmul.f32 %v804, 1.442695
    %v806 = vpow.pop %v805
    %v807 = vadd.f32 %v806, 1.0
    %v808 = vrcp.pop %v807
    %v809 = vmul.f32 %v807, %v808
    %v810 = vsub.f32 1.0, %v809
    %v811 = vmul.f32 %v808, %v810
    %v812 = vadd.f32 %v808, %v811
    %vm813 = vweird.f32 %v807
    %vm814 = vweird.f32 %v808
    %vm815 = vmor %vm813, %vm814
    %v816 = vsel %vm815, %v808, %v812
    %v817 = vand.u32 2147483647, %v807
    %vm818 = vcmp.eq.f32.partialorder %v817, 8.507059e+37
    %v819 = vand.u32 %v807, 2147483648
    %v820 = vor.u32 1.1754944e-38, %v819
    %v821 = vsel %vm818, %v820, %v816
    %v822 = vmul.f32 1.0, %v821
    %v823 = vtanh.pop %v803
    %v824 = vmul.f32 %v822, %v686
    %826 = vrot.lane.b32.xlu0 %v823, 32
    %v827 = vpop.permute.xlu0 %826
    %v829 = vmul.f32 %v822, %v827
    %831 = vrot.lane.b32.xlu0 %v829, 32
    %v832 = vpop.permute.xlu0 %831
    %v834 = vadd.f32 %v824, %v832
    %v835 = vtanh.pop %v834
    %837 = vrot.lane.b32.xlu0 %v835, 32
    %v838 = vpop.permute.xlu0 %837
    %v840 = vmul.f32 %v822, %v838
    %v841 = vsel %vm124, %v780, 0
    %843 = vmatpush.msra.mxu0 0.0
    %844 = vmatpush.msra.mxu0 0.0
    %845 = vmatpush.msra.mxu0 0.0
    %846 = vmatpush.msra.mxu0 0.0
    %847 = vmatpush.msra.mxu0 0.0
    %848 = vmatpush.msra.mxu0 0.0
    %849 = vmatpush.msra.mxu0 0.0
    %850 = vmatpush.msra.mxu0 0.0
    %851 = vmatpush.msra.mxu0 0.0
    %852 = vmatpush.msra.mxu0 0.0
    %853 = vmatpush.msra.mxu0 0.0
    %854 = vmatpush.msra.mxu0 0.0
    %855 = vmatpush.msra.mxu0 %v54
    %856 = vmatpush.msra.mxu0 %v53
    %857 = vmatpush.msra.mxu0 %v52
    %858 = vmatpush.msra.mxu0 %v51
    %859 = vmatmul.f32.gmra.mxu0 %v841
    %v860 = vpop.f32.mrf.mxu0
    %v861 = vadd.f32 %v60, %v860
    %862 = vdwg.mxu0
    %864 = vrot.lane.b32.xlu0 %v840, 64
    %v865 = vpop.permute.xlu0 %864
    %v866 = vsel %vm124, %v865, 0
    %868 = vmatpush.msra.mxu0 0.0
    %869 = vmatpush.msra.mxu0 0.0
    %870 = vmatpush.msra.mxu0 0.0
    %871 = vmatpush.msra.mxu0 0.0
    %872 = vmatpush.msra.mxu0 0.0
    %873 = vmatpush.msra.mxu0 0.0
    %874 = vmatpush.msra.mxu0 0.0
    %875 = vmatpush.msra.mxu0 0.0
    %876 = vmatpush.msra.mxu0 0.0
    %877 = vmatpush.msra.mxu0 0.0
    %878 = vmatpush.msra.mxu0 0.0
    %879 = vmatpush.msra.mxu0 0.0
    %880 = vmatpush.msra.mxu0 %v50
    %881 = vmatpush.msra.mxu0 %v49
    %882 = vmatpush.msra.mxu0 %v48
    %883 = vmatpush.msra.mxu0 %v47
    %884 = vmatmul.f32.gmra.mxu0 %v866
    %v885 = vpop.f32.mrf.mxu0
    %v886 = vadd.f32 0.0, %v885
    %887 = vdwg.mxu0
    %v888 = vadd.f32 %v861, %v886
    %v889 = vxor.u32 %v888, 2147483648
    %v890 = vmul.f32 %v889, 1.442695
    %v891 = vpow.pop %v890
    %v892 = vadd.f32 %v891, 1.0
    %v893 = vrcp.pop %v892
    %v894 = vmul.f32 %v892, %v893
    %v895 = vsub.f32 1.0, %v894
    %v896 = vmul.f32 %v893, %v895
    %v897 = vadd.f32 %v893, %v896
    %vm898 = vweird.f32 %v892
    %vm899 = vweird.f32 %v893
    %vm900 = vmor %vm898, %vm899
    %v901 = vsel %vm900, %v893, %v897
    %v902 = vand.u32 2147483647, %v892
    %vm903 = vcmp.eq.f32.partialorder %v902, 8.507059e+37
    %v904 = vand.u32 %v892, 2147483648
    %v905 = vor.u32 1.1754944e-38, %v904
    %v906 = vsel %vm903, %v905, %v901
    %v907 = vmul.f32 1.0, %v906
    %v908 = vtanh.pop %v888
    %v909 = vmul.f32 %v907, %v771
    %911 = vrot.lane.b32.xlu0 %v908, 32
    %v912 = vpop.permute.xlu0 %911
    %v914 = vmul.f32 %v907, %v912
    %916 = vrot.lane.b32.xlu0 %v914, 32
    %v917 = vpop.permute.xlu0 %916
    %v919 = vadd.f32 %v909, %v917
    %v920 = vtanh.pop %v919
    %922 = vrot.lane.b32.xlu0 %v920, 32
    %v923 = vpop.permute.xlu0 %922
    %v925 = vmul.f32 %v907, %v923
    %927 = vrot.lane.b32.xlu0 %v925, 64
    %v928 = vpop.permute.xlu0 %927
    %930 = vst.msk [vmem:[#allocation2 + $0x28] sm:$0xff] %vm124, %v928
    %931 = vmatpush.msra.mxu0 0.0
    %932 = vmatpush.msra.mxu0 0.0
    %933 = vmatpush.msra.mxu0 0.0
    %934 = vmatpush.msra.mxu0 0.0
    %935 = vmatpush.msra.mxu0 0.0
    %936 = vmatpush.msra.mxu0 0.0
    %937 = vmatpush.msra.mxu0 0.0
    %938 = vmatpush.msra.mxu0 0.0
    %939 = vmatpush.msra.mxu0 0.0
    %940 = vmatpush.msra.mxu0 0.0
    %941 = vmatpush.msra.mxu0 0.0
    %942 = vmatpush.msra.mxu0 0.0
    %943 = vmatpush.msra.mxu0 %v46
    %944 = vmatpush.msra.mxu0 %v45
    %945 = vmatpush.msra.mxu0 %v44
    %946 = vmatpush.msra.mxu0 %v43
    %947 = vmatmul.f32.gmra.mxu0 %v866
    %v948 = vpop.f32.mrf.mxu0
    %v949 = vadd.f32 0.0, %v948
    %950 = vdwg.mxu0
    %v951 = vadd.f32 %v88, %v949
    %v952 = vxor.u32 %v951, 2147483648
    %v953 = vmul.f32 %v952, 1.442695
    %v954 = vpow.pop %v953
    %v955 = vadd.f32 %v954, 1.0
    %v956 = vrcp.pop %v955
    %v957 = vmul.f32 %v955, %v956
    %v958 = vsub.f32 1.0, %v957
    %v959 = vmul.f32 %v956, %v958
    %v960 = vadd.f32 %v956, %v959
    %vm961 = vweird.f32 %v955
    %vm962 = vweird.f32 %v956
    %vm963 = vmor %vm961, %vm962
    %v964 = vsel %vm963, %v956, %v960
    %v965 = vand.u32 2147483647, %v955
    %vm966 = vcmp.eq.f32.partialorder %v965, 8.507059e+37
    %v967 = vand.u32 %v955, 2147483648
    %v968 = vor.u32 1.1754944e-38, %v967
    %v969 = vsel %vm966, %v968, %v964
    %v970 = vmul.f32 1.0, %v969
    %v971 = vtanh.pop %v951
    %v972 = vmul.f32 %v970, %v834
    %974 = vrot.lane.b32.xlu0 %v971, 32
    %v975 = vpop.permute.xlu0 %974
    %v977 = vmul.f32 %v970, %v975
    %979 = vrot.lane.b32.xlu0 %v977, 32
    %v980 = vpop.permute.xlu0 %979
    %v982 = vadd.f32 %v972, %v980
    %v983 = vtanh.pop %v982
    %985 = vrot.lane.b32.xlu0 %v983, 32
    %v986 = vpop.permute.xlu0 %985
    %v988 = vmul.f32 %v970, %v986
    %v989 = vsel %vm124, %v928, 0
    %991 = vmatpush.msra.mxu0 0.0
    %992 = vmatpush.msra.mxu0 0.0
    %993 = vmatpush.msra.mxu0 0.0
    %994 = vmatpush.msra.mxu0 0.0
    %995 = vmatpush.msra.mxu0 0.0
    %996 = vmatpush.msra.mxu0 0.0
    %997 = vmatpush.msra.mxu0 0.0
    %998 = vmatpush.msra.mxu0 0.0
    %999 = vmatpush.msra.mxu0 0.0
    %1000 = vmatpush.msra.mxu0 0.0
    %1001 = vmatpush.msra.mxu0 0.0
    %1002 = vmatpush.msra.mxu0 0.0
    %1003 = vmatpush.msra.mxu0 %v54
    %1004 = vmatpush.msra.mxu0 %v53
    %1005 = vmatpush.msra.mxu0 %v52
    %1006 = vmatpush.msra.mxu0 %v51
    %1007 = vmatmul.f32.gmra.mxu0 %v989
    %v1008 = vpop.f32.mrf.mxu0
    %v1009 = vadd.f32 %v60, %v1008
    %1010 = vdwg.mxu0
    %1012 = vrot.lane.b32.xlu0 %v988, 64
    %v1013 = vpop.permute.xlu0 %1012
    %v1014 = vsel %vm124, %v1013, 0
    %1016 = vmatpush.msra.mxu0 0.0
    %1017 = vmatpush.msra.mxu0 0.0
    %1018 = vmatpush.msra.mxu0 0.0
    %1019 = vmatpush.msra.mxu0 0.0
    %1020 = vmatpush.msra.mxu0 0.0
    %1021 = vmatpush.msra.mxu0 0.0
    %1022 = vmatpush.msra.mxu0 0.0
    %1023 = vmatpush.msra.mxu0 0.0
    %1024 = vmatpush.msra.mxu0 0.0
    %1025 = vmatpush.msra.mxu0 0.0
    %1026 = vmatpush.msra.mxu0 0.0
    %1027 = vmatpush.msra.mxu0 0.0
    %1028 = vmatpush.msra.mxu0 %v50
    %1029 = vmatpush.msra.mxu0 %v49
    %1030 = vmatpush.msra.mxu0 %v48
    %1031 = vmatpush.msra.mxu0 %v47
    %1032 = vmatmul.f32.gmra.mxu0 %v1014
    %v1033 = vpop.f32.mrf.mxu0
    %v1034 = vadd.f32 0.0, %v1033
    %1035 = vdwg.mxu0
    %v1036 = vadd.f32 %v1009, %v1034
    %v1037 = vxor.u32 %v1036, 2147483648
    %v1038 = vmul.f32 %v1037, 1.442695
    %v1039 = vpow.pop %v1038
    %v1040 = vadd.f32 %v1039, 1.0
    %v1041 = vrcp.pop %v1040
    %v1042 = vmul.f32 %v1040, %v1041
    %v1043 = vsub.f32 1.0, %v1042
    %v1044 = vmul.f32 %v1041, %v1043
    %v1045 = vadd.f32 %v1041, %v1044
    %vm1046 = vweird.f32 %v1040
    %vm1047 = vweird.f32 %v1041
    %vm1048 = vmor %vm1046, %vm1047
    %v1049 = vsel %vm1048, %v1041, %v1045
    %v1050 = vand.u32 2147483647, %v1040
    %vm1051 = vcmp.eq.f32.partialorder %v1050, 8.507059e+37
    %v1052 = vand.u32 %v1040, 2147483648
    %v1053 = vor.u32 1.1754944e-38, %v1052
    %v1054 = vsel %vm1051, %v1053, %v1049
    %v1055 = vmul.f32 1.0, %v1054
    %v1056 = vtanh.pop %v1036
    %v1057 = vmul.f32 %v1055, %v919
    %1059 = vrot.lane.b32.xlu0 %v1056, 32
    %v1060 = vpop.permute.xlu0 %1059
    %v1062 = vmul.f32 %v1055, %v1060
    %1064 = vrot.lane.b32.xlu0 %v1062, 32
    %v1065 = vpop.permute.xlu0 %1064
    %v1067 = vadd.f32 %v1057, %v1065
    %v1068 = vtanh.pop %v1067
    %1070 = vrot.lane.b32.xlu0 %v1068, 32
    %v1071 = vpop.permute.xlu0 %1070
    %v1073 = vmul.f32 %v1055, %v1071
    %1075 = vrot.lane.b32.xlu0 %v1073, 64
    %v1076 = vpop.permute.xlu0 %1075
    %1078 = vst.msk [vmem:[#allocation2 + $0x30] sm:$0xff] %vm124, %v1076
    %1079 = vmatpush.msra.mxu0 0.0
    %1080 = vmatpush.msra.mxu0 0.0
    %1081 = vmatpush.msra.mxu0 0.0
    %1082 = vmatpush.msra.mxu0 0.0
    %1083 = vmatpush.msra.mxu0 0.0
    %1084 = vmatpush.msra.mxu0 0.0
    %1085 = vmatpush.msra.mxu0 0.0
    %1086 = vmatpush.msra.mxu0 0.0
    %1087 = vmatpush.msra.mxu0 0.0
    %1088 = vmatpush.msra.mxu0 0.0
    %1089 = vmatpush.msra.mxu0 0.0
    %1090 = vmatpush.msra.mxu0 0.0
    %1091 = vmatpush.msra.mxu0 %v46
    %1092 = vmatpush.msra.mxu0 %v45
    %1093 = vmatpush.msra.mxu0 %v44
    %1094 = vmatpush.msra.mxu0 %v43
    %1095 = vmatmul.f32.gmra.mxu0 %v1014
    %v1096 = vpop.f32.mrf.mxu0
    %v1097 = vadd.f32 0.0, %v1096
    %1098 = vdwg.mxu0
    %v1099 = vadd.f32 %v88, %v1097
    %v1100 = vxor.u32 %v1099, 2147483648
    %v1101 = vmul.f32 %v1100, 1.442695
    %v1102 = vpow.pop %v1101
    %v1103 = vadd.f32 %v1102, 1.0
    %v1104 = vrcp.pop %v1103
    %v1105 = vmul.f32 %v1103, %v1104
    %v1106 = vsub.f32 1.0, %v1105
    %v1107 = vmul.f32 %v1104, %v1106
    %v1108 = vadd.f32 %v1104, %v1107
    %vm1109 = vweird.f32 %v1103
    %vm1110 = vweird.f32 %v1104
    %vm1111 = vmor %vm1109, %vm1110
    %v1112 = vsel %vm1111, %v1104, %v1108
    %v1113 = vand.u32 2147483647, %v1103
    %vm1114 = vcmp.eq.f32.partialorder %v1113, 8.507059e+37
    %v1115 = vand.u32 %v1103, 2147483648
    %v1116 = vor.u32 1.1754944e-38, %v1115
    %v1117 = vsel %vm1114, %v1116, %v1112
    %v1118 = vmul.f32 1.0, %v1117
    %v1119 = vtanh.pop %v1099
    %v1120 = vmul.f32 %v1118, %v982
    %1122 = vrot.lane.b32.xlu0 %v1119, 32
    %v1123 = vpop.permute.xlu0 %1122
    %v1125 = vmul.f32 %v1118, %v1123
    %1127 = vrot.lane.b32.xlu0 %v1125, 32
    %v1128 = vpop.permute.xlu0 %1127
    %v1130 = vadd.f32 %v1120, %v1128
    %v1131 = vtanh.pop %v1130
    %1133 = vrot.lane.b32.xlu0 %v1131, 32
    %v1134 = vpop.permute.xlu0 %1133
    %v1136 = vmul.f32 %v1118, %v1134
    %v1137 = vsel %vm124, %v1076, 0
    %1139 = vmatpush.msra.mxu0 0.0
    %1140 = vmatpush.msra.mxu0 0.0
    %1141 = vmatpush.msra.mxu0 0.0
    %1142 = vmatpush.msra.mxu0 0.0
    %1143 = vmatpush.msra.mxu0 0.0
    %1144 = vmatpush.msra.mxu0 0.0
    %1145 = vmatpush.msra.mxu0 0.0
    %1146 = vmatpush.msra.mxu0 0.0
    %1147 = vmatpush.msra.mxu0 0.0
    %1148 = vmatpush.msra.mxu0 0.0
    %1149 = vmatpush.msra.mxu0 0.0
    %1150 = vmatpush.msra.mxu0 0.0
    %1151 = vmatpush.msra.mxu0 %v54
    %1152 = vmatpush.msra.mxu0 %v53
    %1153 = vmatpush.msra.mxu0 %v52
    %1154 = vmatpush.msra.mxu0 %v51
    %1155 = vmatmul.f32.gmra.mxu0 %v1137
    %v1156 = vpop.f32.mrf.mxu0
    %v1157 = vadd.f32 %v60, %v1156
    %1158 = vdwg.mxu0
    %1160 = vrot.lane.b32.xlu0 %v1136, 64
    %v1161 = vpop.permute.xlu0 %1160
    %v1162 = vsel %vm124, %v1161, 0
    %1164 = vmatpush.msra.mxu0 0.0
    %1165 = vmatpush.msra.mxu0 0.0
    %1166 = vmatpush.msra.mxu0 0.0
    %1167 = vmatpush.msra.mxu0 0.0
    %1168 = vmatpush.msra.mxu0 0.0
    %1169 = vmatpush.msra.mxu0 0.0
    %1170 = vmatpush.msra.mxu0 0.0
    %1171 = vmatpush.msra.mxu0 0.0
    %1172 = vmatpush.msra.mxu0 0.0
    %1173 = vmatpush.msra.mxu0 0.0
    %1174 = vmatpush.msra.mxu0 0.0
    %1175 = vmatpush.msra.mxu0 0.0
    %1176 = vmatpush.msra.mxu0 %v50
    %1177 = vmatpush.msra.mxu0 %v49
    %1178 = vmatpush.msra.mxu0 %v48
    %1179 = vmatpush.msra.mxu0 %v47
    %1180 = vmatmul.f32.gmra.mxu0 %v1162
    %v1181 = vpop.f32.mrf.mxu0
    %v1182 = vadd.f32 0.0, %v1181
    %1183 = vdwg.mxu0
    %v1184 = vadd.f32 %v1157, %v1182
    %v1185 = vxor.u32 %v1184, 2147483648
    %v1186 = vmul.f32 %v1185, 1.442695
    %v1187 = vpow.pop %v1186
    %v1188 = vadd.f32 %v1187, 1.0
    %v1189 = vrcp.pop %v1188
    %v1190 = vmul.f32 %v1188, %v1189
    %v1191 = vsub.f32 1.0, %v1190
    %v1192 = vmul.f32 %v1189, %v1191
    %v1193 = vadd.f32 %v1189, %v1192
    %vm1194 = vweird.f32 %v1188
    %vm1195 = vweird.f32 %v1189
    %vm1196 = vmor %vm1194, %vm1195
    %v1197 = vsel %vm1196, %v1189, %v1193
    %v1198 = vand.u32 2147483647, %v1188
    %vm1199 = vcmp.eq.f32.partialorder %v1198, 8.507059e+37
    %v1200 = vand.u32 %v1188, 2147483648
    %v1201 = vor.u32 1.1754944e-38, %v1200
    %v1202 = vsel %vm1199, %v1201, %v1197
    %v1203 = vmul.f32 1.0, %v1202
    %v1204 = vtanh.pop %v1184
    %v1205 = vmul.f32 %v1203, %v1067
    %1207 = vrot.lane.b32.xlu0 %v1204, 32
    %v1208 = vpop.permute.xlu0 %1207
    %v1210 = vmul.f32 %v1203, %v1208
    %1212 = vrot.lane.b32.xlu0 %v1210, 32
    %v1213 = vpop.permute.xlu0 %1212
    %v1215 = vadd.f32 %v1205, %v1213
    %v1216 = vtanh.pop %v1215
    %1218 = vrot.lane.b32.xlu0 %v1216, 32
    %v1219 = vpop.permute.xlu0 %1218
    %v1221 = vmul.f32 %v1203, %v1219
    %1223 = vrot.lane.b32.xlu0 %v1221, 64
    %v1224 = vpop.permute.xlu0 %1223
    %1226 = vst.msk [vmem:[#allocation2 + $0x38] sm:$0xff] %vm124, %v1224
    %v1227 = vld [vmem:[#allocation2] sm:$0xff]
    %v1228 = vld [vmem:[#allocation2 + $0x8] sm:$0xff]
    %v1229 = vld [vmem:[#allocation2 + $0x10] sm:$0xff]
    %v1230 = vld [vmem:[#allocation2 + $0x18] sm:$0xff]
    %v1231 = vld [vmem:[#allocation2 + $0x20] sm:$0xff]
    %v1232 = vld [vmem:[#allocation2 + $0x28] sm:$0xff]
    %v1233 = vld [vmem:[#allocation2 + $0x30] sm:$0xff]
    %v1234 = vld [vmem:[#allocation2 + $0x38] sm:$0xff]
    %v1236 = vsel %vm124, %v1227, 0
    %v1239 = vsel %vm124, %v1228, 0
    %v1242 = vsel %vm124, %v1229, 0
    %v1245 = vsel %vm124, %v1230, 0
    %v1248 = vsel %vm124, %v1231, 0
    %v1251 = vsel %vm124, %v1232, 0
    %v1254 = vsel %vm124, %v1233, 0
    %v1257 = vsel %vm124, %v1234, 0
    %1259 = vmatpush.msra.mxu0 0.0
    %1260 = vmatpush.msra.mxu0 0.0
    %1261 = vmatpush.msra.mxu0 0.0
    %1262 = vmatpush.msra.mxu0 0.0
    %1263 = vmatpush.msra.mxu0 0.0
    %1264 = vmatpush.msra.mxu0 0.0
    %1265 = vmatpush.msra.mxu0 0.0
    %1266 = vmatpush.msra.mxu0 0.0
    %1267 = vmatpush.msra.mxu0 0.0
    %1268 = vmatpush.msra.mxu0 0.0
    %1269 = vmatpush.msra.mxu0 0.0
    %1270 = vmatpush.msra.mxu0 0.0
    %1271 = vmatpush.msra.mxu0 %v58
    %1272 = vmatpush.msra.mxu0 %v57
    %1273 = vmatpush.msra.mxu0 %v56
    %1274 = vmatpush.msra.mxu0 %v55
    %1275 = vmatmul.f32.gmra.mxu0 %v1236
    %v1276 = vpop.f32.mrf.mxu0
    %v1277 = vadd.f32 %v61, %v1276
    %1278 = vmatmul.f32.gmra.mxu0 %v1239
    %v1279 = vpop.f32.mrf.mxu0
    %v1280 = vadd.f32 %v62, %v1279
    %1281 = vmatmul.f32.gmra.mxu0 %v1242
    %v1282 = vpop.f32.mrf.mxu0
    %v1283 = vadd.f32 %v63, %v1282
    %1284 = vmatmul.f32.gmra.mxu0 %v1245
    %v1285 = vpop.f32.mrf.mxu0
    %v1286 = vadd.f32 %v64, %v1285
    %1287 = vmatmul.f32.gmra.mxu0 %v1248
    %v1288 = vpop.f32.mrf.mxu0
    %v1289 = vadd.f32 %v65, %v1288
    %1290 = vmatmul.f32.gmra.mxu0 %v1251
    %v1291 = vpop.f32.mrf.mxu0
    %v1292 = vadd.f32 %v66, %v1291
    %1293 = vmatmul.f32.gmra.mxu0 %v1254
    %v1294 = vpop.f32.mrf.mxu0
    %v1295 = vadd.f32 %v67, %v1294
    %1296 = vmatmul.f32.gmra.mxu0 %v1257
    %v1297 = vpop.f32.mrf.mxu0
    %v1298 = vadd.f32 %v68, %v1297
    %1299 = vdwg.mxu0
    %v1300 = vtanh.pop %v1277
    %v1301 = vtanh.pop %v1280
    %v1302 = vtanh.pop %v1283
    %v1303 = vtanh.pop %v1286
    %v1304 = vtanh.pop %v1289
    %v1305 = vtanh.pop %v1292
    %v1306 = vtanh.pop %v1295
    %v1307 = vtanh.pop %v1298
    %1308 = vst [vmem:[%s2] sm:$0xff] %v1300
    %1309 = vst [vmem:[%s2 + $0x8] sm:$0xff] %v1301
    %1310 = vst [vmem:[%s2 + $0x10] sm:$0xff] %v1302
    %1311 = vst [vmem:[%s2 + $0x18] sm:$0xff] %v1303
    %1312 = vst [vmem:[%s2 + $0x20] sm:$0xff] %v1304
    %1313 = vst [vmem:[%s2 + $0x28] sm:$0xff] %v1305
    %1314 = vst [vmem:[%s2 + $0x30] sm:$0xff] %v1306
    %1315 = vst [vmem:[%s2 + $0x38] sm:$0xff] %v1307
    // Predicated region
    $region14: #{lstm_text_to_music_forward.1} parent=1 // pred_check
      _
    $region15: #{lstm_text_to_music_forward.1} parent=1 // pred_check_branch
      %1317 = sbr.rel (0) target = $region17
    $region16: #{lstm_text_to_music_forward.1} parent=1 // pred_region
      _
    $region17: #{lstm_text_to_music_forward.1} parent=1 // pred_fallthru
      _
    // Predicated region
    $region18: #{lstm_text_to_music_forward.1} parent=1 // pred_check
      _
    $region19: #{lstm_text_to_music_forward.1} parent=1 // pred_check_branch
      %1319 = sbr.rel (0) target = $region21
    $region20: #{lstm_text_to_music_forward.1} parent=1 // pred_region
      _
    $region21: #{lstm_text_to_music_forward.1} parent=1 // pred_fallthru
      _
    %1320 = vsyncpa [#allocation4], 1

</llo_original>
